<compile_context>
chip_gen: v7x
topology: tpu7x:2x2x1
jax: 0.10.0
libtpu: 0.0.40
codegen_flags: <defaults>
</compile_context>

<pallas_src>
import jax
import jax.numpy as jnp
from jax.experimental import pallas as pl
from jax.experimental.pallas import tpu as pltpu


# ----------------------------- fused Pallas kernel ---------------------------

def _up_fused_kernel(x1_ref, x2_ref, uh_ref, mw_ref, shift_ref,
                     b1a_ref, b1b_ref, bias1_ref, b2_ref, bias2_ref, o_ref):
    # x1_ref    : (1, H1, W1*C1)   small feature map, row-flat NHWC
    # x2_ref    : (1, H2, W2*C2)   skip connection, row-flat NHWC
    # uh_ref    : (H2, H1)         height interpolation matrix
    # mw_ref    : (W1*C1, W2*C1)   width interpolation matrix (per-channel block diag)
    # shift_ref : (2, H2, H2)      [0]: out[h] <- in[h-1], [1]: out[h] <- in[h+1]
    # b1a_ref   : (3, W2*C2,  W2*Cout)  conv1 banded weights acting on x2 channels
    # b1b_ref   : (3, W2*C1,  W2*Cout)  conv1 banded weights acting on x1_up channels
    # bias1_ref : (1, W2*Cout)          folded BN1 bias (lane-tiled)
    # b2_ref    : (3, W2*Cout, W2*Cout) conv2 banded weights
    # bias2_ref : (1, W2*Cout)          folded BN2 bias (lane-tiled)
    # o_ref     : (1, H2, W2*Cout)      lane-dense output
    f32 = jnp.float32

    def mm(a, b):
        return jnp.dot(a, b, preferred_element_type=f32)

    # Bilinear x2 upsample (align_corners=True) as two MXU matmuls.
    x1w = mm(x1_ref[0], mw_ref[...])        # (H1, W2*C1)  width interp
    x1up = mm(uh_ref[...], x1w)             # (H2, W2*C1)  height interp
    x2r = x2_ref[0]                         # (H2, W2*C2)

    s_dn = shift_ref[0]                     # (H2, H2): row h <- row h-1 (top row 0)
    s_up = shift_ref[1]                     # (H2, H2): row h <- row h+1 (bottom row 0)

    def conv3x3_bn_relu(pairs, bias_row):
        # pairs: tuple of (rows (H2, W*Cin), banded weight ref (3, W*Cin, W*Cout)).
        # The banded matrices handle the kw taps + width zero-padding; the kh
        # taps (height padding) are handled by the shift-matrix matmuls below.
        def tap(kh):
            acc = None
            for rows, wref in pairs:
                t = mm(rows, wref[kh])
                acc = t if acc is None else acc + t
            return acc

        p0, p1, p2 = tap(0), tap(1), tap(2)          # each (H2, W*Cout)
        acc = p1 + mm(s_dn, p0) + mm(s_up, p2)       # out[h] = in[h-1]@B0+in[h]@B1+in[h+1]@B2
        return jnp.maximum(acc + bias_row, 0.0)      # folded-BN bias + ReLU

    y1 = conv3x3_bn_relu(((x2r, b1a_ref), (x1up, b1b_ref)), bias1_ref[...])
    y2 = conv3x3_bn_relu(((y1, b2_ref),), bias2_ref[...])
    o_ref[0] = y2.astype(o_ref.dtype)


# ----------------------------- wrapper helpers --------------------------------

def _width_banded(w_scaled, W):
    """(3,3,Cin,Cout) conv weight -> 3 banded matrices (W*Cin, W*Cout), one per kh:
        B[kh][wi*Cin+ci, wo*Cout+co] = w[kh, kw, ci, co]  with wi = wo + kw - 1,
    so a row-flat NHWC image row is convolved along W by a single matmul.
    Width zero-padding (padding=1) falls out by omitting out-of-range diagonals."""
    _, _, cin, cout = w_scaled.shape
    mats = []
    for kh in range(3):
        b = jnp.zeros((W * cin, W * cout), jnp.float32)
        for kw in range(3):
            diag = jnp.eye(W, k=1 - kw, dtype=jnp.float32)   # [wi,wo]=1 iff wi==wo+kw-1
            b = b + jnp.kron(diag, w_scaled[kh, kw].astype(jnp.float32))
        mats.append(b)
    return jnp.stack(mats, axis=0)                            # (3, W*Cin, W*Cout)


def _interp_matrix(out_size, in_size):
    """1-D linear interpolation matrix (out,in) matching
    nn.Upsample(scale_factor=2, mode='bilinear', align_corners=True)."""
    if in_size == 1:
        return jnp.ones((out_size, 1), jnp.float32)
    src = jnp.arange(out_size, dtype=jnp.float32) * ((in_size - 1) / (out_size - 1))
    lo = jnp.clip(jnp.floor(src).astype(jnp.int32), 0, in_size - 1)
    hi = jnp.clip(lo + 1, 0, in_size - 1)
    frac = src - lo.astype(jnp.float32)
    return (jax.nn.one_hot(lo, in_size, dtype=jnp.float32) * (1.0 - frac)[:, None]
            + jax.nn.one_hot(hi, in_size, dtype=jnp.float32) * frac[:, None])


def fold_bn(conv_bias, bn, eps=1e-5):
    scale = bn["gamma"] / jnp.sqrt(bn["var"] + eps)
    bias = bn["beta"] + (conv_bias - bn["mean"]) * scale
    return scale, bias


def init_params(key, in_channels, out_channels):
    """Deterministic init mirroring PyTorch Conv2d / BatchNorm2d defaults."""
    k1, k2 = jax.random.split(key, 2)

    def conv_init(k, cin, cout):
        fan_in = cin * 3 * 3
        bound = 1.0 / float(fan_in) ** 0.5
        kw, kb = jax.random.split(k)
        # PyTorch layout (Cout, Cin, 3, 3) -> kernel layout (3, 3, Cin, Cout)
        w = jax.random.uniform(kw, (cout, cin, 3, 3), jnp.float32, -bound, bound)
        b = jax.random.uniform(kb, (cout,), jnp.float32, -bound, bound)
        return jnp.transpose(w, (2, 3, 1, 0)), b

    w1, b1 = conv_init(k1, in_channels, out_channels)
    w2, b2 = conv_init(k2, out_channels, out_channels)

    def bn_init(c):
        return dict(gamma=jnp.ones((c,), jnp.float32),
                    beta=jnp.zeros((c,), jnp.float32),
                    mean=jnp.zeros((c,), jnp.float32),
                    var=jnp.ones((c,), jnp.float32))

    return dict(w1=w1, b1=b1, bn1=bn_init(out_channels),
                w2=w2, b2=b2, bn2=bn_init(out_channels))


# ----------------------------- forward pass -----------------------------------

def up_forward(params, x1_nchw, x2_nchw):
    """Matches Up.forward(x1, x2) (inference-mode BN). NCHW in/out like PyTorch."""
    x1 = jnp.transpose(x1_nchw, (0, 2, 3, 1))  # -> NHWC
    x2 = jnp.transpose(x2_nchw, (0, 2, 3, 1))
    N, H1, W1, C1 = x1.shape
    _, H2, W2, C2 = x2.shape
    # TODO(synk): some UNet `Up` variants F.pad x1 when x2 is not exactly 2x the
    # spatial size of x1; this implementation assumes exact 2x (as in the spec).
    Cout = params["w1"].shape[-1]

    # Fold BatchNorm (inference) scale into the conv weights; only a bias-add
    # survives in the kernel epilogue.
    s1, bias1 = fold_bn(params["b1"], params["bn1"])
    s2, bias2 = fold_bn(params["b2"], params["bn2"])
    w1s = params["w1"] * s1                 # (3,3,C2+C1,Cout)
    w2s = params["w2"] * s2                 # (3,3,Cout,Cout)

    # Fold the channel concat into conv1: conv1(cat([x2, x1_up])) =
    # conv1a(x2) + conv1b(x1_up)  (torch.cat puts x2 channels first).
    b1a = _width_banded(w1s[:, :, :C2, :], W2)    # (3, W2*C2,  W2*Cout)
    b1b = _width_banded(w1s[:, :, C2:, :], W2)    # (3, W2*C1,  W2*Cout)
    b2 = _width_banded(w2s, W2)                   # (3, W2*Cout, W2*Cout)

    # Bilinear upsample as two matmuls: width interp kron'ed with I_C so it acts
    # directly on row-flat (w-major, channel-minor) rows; height interp as-is.
    uh = _interp_matrix(H2, H1)                                              # (H2, H1)
    mw = jnp.kron(_interp_matrix(W2, W1).T, jnp.eye(C1, dtype=jnp.float32))  # (W1*C1, W2*C1)

    # Row-shift matrices realizing the kh = 0 / 2 taps (height zero-padding).
    shift = jnp.stack([jnp.eye(H2, k=-1, dtype=jnp.float32),   # out[h] <- in[h-1]
                       jnp.eye(H2, k=1, dtype=jnp.float32)])   # out[h] <- in[h+1]

    bias1_row = jnp.tile(bias1.astype(jnp.float32), W2).reshape(1, W2 * Cout)
    bias2_row = jnp.tile(bias2.astype(jnp.float32), W2).reshape(1, W2 * Cout)

    # Row-flat, lane-dense activations (free reshapes).
    x1_rows = x1.reshape(N, H1, W1 * C1).astype(jnp.float32)
    x2_rows = x2.reshape(N, H2, W2 * C2).astype(jnp.float32)

    kout = W2 * Cout
    out_rows = pl.pallas_call(
        _up_fused_kernel,
        out_shape=jax.ShapeDtypeStruct((N, H2, kout), jnp.float32),
        grid_spec=pltpu.PrefetchScalarGridSpec(
            num_scalar_prefetch=0,
            grid=(N,),
            in_specs=[
                pl.BlockSpec((1, H1, W1 * C1), lambda n: (n, 0, 0)),
                pl.BlockSpec((1, H2, W2 * C2), lambda n: (n, 0, 0)),
                pl.BlockSpec((H2, H1), lambda n: (0, 0)),
                pl.BlockSpec((W1 * C1, W2 * C1), lambda n: (0, 0)),
                pl.BlockSpec((2, H2, H2), lambda n: (0, 0, 0)),
                pl.BlockSpec(b1a.shape, lambda n: (0, 0, 0)),
                pl.BlockSpec(b1b.shape, lambda n: (0, 0, 0)),
                pl.BlockSpec((1, kout), lambda n: (0, 0)),
                pl.BlockSpec(b2.shape, lambda n: (0, 0, 0)),
                pl.BlockSpec((1, kout), lambda n: (0, 0)),
            ],
            out_specs=pl.BlockSpec((1, H2, kout), lambda n: (n, 0, 0)),
        ),
        compiler_params=pltpu.CompilerParams(
            dimension_semantics=("parallel",)),
    )(x1_rows, x2_rows, uh, mw, shift, b1a, b1b, bias1_row, b2, bias2_row)

    out = out_rows.reshape(N, H2, W2, Cout)
    return jnp.transpose(out, (0, 3, 1, 2))  # -> NCHW


# ----------------------------- pure-JAX reference ------------------------------

def _bilinear_upsample_x2_align_corners(x):
    N, H, W, C = x.shape
    Ho, Wo = 2 * H, 2 * W

    def coords(out_size, in_size):
        if out_size == 1:
            return jnp.zeros((out_size,), jnp.float32)
        return jnp.arange(out_size, dtype=jnp.float32) * ((in_size - 1) / (out_size - 1))

    yc, xc = coords(Ho, H), coords(Wo, W)
    y0 = jnp.clip(jnp.floor(yc).astype(jnp.int32), 0, H - 1)
    y1 = jnp.clip(y0 + 1, 0, H - 1)
    x0 = jnp.clip(jnp.floor(xc).astype(jnp.int32), 0, W - 1)
    x1 = jnp.clip(x0 + 1, 0, W - 1)
    wy = (yc - y0.astype(jnp.float32))[None, :, None, None]
    wx = (xc - x0.astype(jnp.float32))[None, None, :, None]

    def g(yi, xi):
        return x[:, yi][:, :, xi]

    top = g(y0, x0) * (1.0 - wx) + g(y0, x1) * wx
    bot = g(y1, x0) * (1.0 - wx) + g(y1, x1) * wx
    return top * (1.0 - wy) + bot * wy


def _reference_up(params, x1_nchw, x2_nchw, eps=1e-5):
    x1 = jnp.transpose(x1_nchw, (0, 2, 3, 1))
    x2 = jnp.transpose(x2_nchw, (0, 2, 3, 1))
    x = jnp.concatenate([x2, _bilinear_upsample_x2_align_corners(x1)], axis=-1)

    def block(x, w, b, bn):
        y = jax.lax.conv_general_dilated(
            x, w, (1, 1), ((1, 1), (1, 1)),
            dimension_numbers=("NHWC", "HWIO", "NHWC"),
            precision=jax.lax.Precision.HIGHEST) + b
        y = (y - bn["mean"]) * bn["gamma"] / jnp.sqrt(bn["var"] + eps) + bn["beta"]
        return jnp.maximum(y, 0.0)

    y = block(x, params["w1"], params["b1"], params["bn1"])
    y = block(y, params["w2"], params["b2"], params["bn2"])
    return jnp.transpose(y, (0, 3, 1, 2))


# ------------------------------------ main -------------------------------------

if __name__ == "__main__":
    key = jax.random.PRNGKey(0)
    k_x1, k_x2, k_p = jax.random.split(key, 3)

    # x1: deeper feature map (smaller spatial), x2: skip connection.
    N = 2
    C1, H1, W1 = 8, 8, 8        # x1 NCHW
    C2, H2, W2 = 8, 16, 16      # x2 NCHW (spatial = 2 * x1 spatial)
    in_channels = C1 + C2       # channels after concat
    out_channels = 8            # W2 * out_channels = 128 -> lane-dense output

    x1 = jax.random.normal(k_x1, (N, C1, H1, W1), jnp.float32)
    x2 = jax.random.normal(k_x2, (N, C2, H2, W2), jnp.float32)
    params = init_params(k_p, in_channels, out_channels)

    out = jax.jit(up_forward)(params, x1, x2)
    out = jax.block_until_ready(out)
    assert out.shape == (N, out_channels, H2, W2), out.shape

    ref = jax.block_until_ready(jax.jit(_reference_up)(params, x1, x2))
    err = float(jnp.max(jnp.abs(out - ref)))
    assert err < 2e-3, f"max abs err vs reference: {err}"

    print("KERNEL_OK")
</pallas_src>

<mosaic_0001>
module attributes {stable_mosaic.version = 11 : i64} {
  func.func @_up_fused_kernel(%arg0: i32, %arg1: memref<1x8x64xf32, #tpu.memory_space<vmem>>, %arg2: memref<1x16x128xf32, #tpu.memory_space<vmem>>, %arg3: memref<16x8xf32, #tpu.memory_space<vmem>>, %arg4: memref<64x128xf32, #tpu.memory_space<vmem>>, %arg5: memref<2x16x16xf32, #tpu.memory_space<vmem>>, %arg6: memref<3x128x128xf32, #tpu.memory_space<vmem>>, %arg7: memref<3x128x128xf32, #tpu.memory_space<vmem>>, %arg8: memref<1x128xf32, #tpu.memory_space<vmem>>, %arg9: memref<3x128x128xf32, #tpu.memory_space<vmem>>, %arg10: memref<1x128xf32, #tpu.memory_space<vmem>>, %arg11: memref<1x16x128xf32, #tpu.memory_space<vmem>>) attributes {dimension_semantics = [#tpu.dimension_semantics<parallel>], iteration_bounds = array<i64: 2>, scalar_prefetch = 0 : i64, scratch_operands = 0 : i64, tpu.core_type = #tpu.core_type<tc>, window_params = [{transform_indices = @transform_0, window_bounds = array<i64: 1, 8, 64>}, {transform_indices = @transform_1, window_bounds = array<i64: 1, 16, 128>}, {pipeline_mode = #tpu.pipeline_mode<synchronous>, transform_indices = @transform_2, window_bounds = array<i64: 16, 8>}, {pipeline_mode = #tpu.pipeline_mode<synchronous>, transform_indices = @transform_3, window_bounds = array<i64: 64, 128>}, {pipeline_mode = #tpu.pipeline_mode<synchronous>, transform_indices = @transform_4, window_bounds = array<i64: 2, 16, 16>}, {pipeline_mode = #tpu.pipeline_mode<synchronous>, transform_indices = @transform_5, window_bounds = array<i64: 3, 128, 128>}, {pipeline_mode = #tpu.pipeline_mode<synchronous>, transform_indices = @transform_6, window_bounds = array<i64: 3, 128, 128>}, {pipeline_mode = #tpu.pipeline_mode<synchronous>, transform_indices = @transform_7, window_bounds = array<i64: 1, 128>}, {pipeline_mode = #tpu.pipeline_mode<synchronous>, transform_indices = @transform_8, window_bounds = array<i64: 3, 128, 128>}, {pipeline_mode = #tpu.pipeline_mode<synchronous>, transform_indices = @transform_9, window_bounds = array<i64: 1, 128>}, {transform_indices = @transform_10, window_bounds = array<i64: 1, 16, 128>}]} {
    %c0 = arith.constant 0 : index
    %c0_0 = arith.constant 0 : index
    %c0_1 = arith.constant 0 : index
    %0 = vector.load %arg1[%c0, %c0_0, %c0_1] : memref<1x8x64xf32, #tpu.memory_space<vmem>>, vector<1x8x64xf32>
    %1 = vector.shape_cast %0 : vector<1x8x64xf32> to vector<8x64xf32>
    %c0_2 = arith.constant 0 : index
    %c0_3 = arith.constant 0 : index
    %2 = vector.load %arg4[%c0_2, %c0_3] : memref<64x128xf32, #tpu.memory_space<vmem>>, vector<64x128xf32>
    %cst = arith.constant dense<0.000000e+00> : vector<8x128xf32>
    %3 = tpu.matmul %1, %2, %cst {dimension_numbers = #tpu.dot_dimension_numbers<[1], [0], [0], [1], [0, 0, 1, 1], [], []>} : vector<8x64xf32>, vector<64x128xf32>, vector<8x128xf32> -> vector<8x128xf32>
    %c0_4 = arith.constant 0 : index
    %c0_5 = arith.constant 0 : index
    %4 = vector.load %arg3[%c0_4, %c0_5] : memref<16x8xf32, #tpu.memory_space<vmem>>, vector<16x8xf32>
    %cst_6 = arith.constant dense<0.000000e+00> : vector<16x128xf32>
    %5 = tpu.matmul %4, %3, %cst_6 {dimension_numbers = #tpu.dot_dimension_numbers<[1], [0], [0], [1], [0, 0, 1, 1], [], []>} : vector<16x8xf32>, vector<8x128xf32>, vector<16x128xf32> -> vector<16x128xf32>
    %c0_7 = arith.constant 0 : index
    %c0_8 = arith.constant 0 : index
    %c0_9 = arith.constant 0 : index
    %6 = vector.load %arg2[%c0_7, %c0_8, %c0_9] : memref<1x16x128xf32, #tpu.memory_space<vmem>>, vector<1x16x128xf32>
    %7 = vector.shape_cast %6 : vector<1x16x128xf32> to vector<16x128xf32>
    %c0_10 = arith.constant 0 : index
    %c0_11 = arith.constant 0 : index
    %c0_12 = arith.constant 0 : index
    %8 = vector.load %arg5[%c0_10, %c0_11, %c0_12] : memref<2x16x16xf32, #tpu.memory_space<vmem>>, vector<1x16x16xf32>
    %9 = vector.shape_cast %8 : vector<1x16x16xf32> to vector<16x16xf32>
    %c1 = arith.constant 1 : index
    %c0_13 = arith.constant 0 : index
    %c0_14 = arith.constant 0 : index
    %10 = vector.load %arg5[%c1, %c0_13, %c0_14] : memref<2x16x16xf32, #tpu.memory_space<vmem>>, vector<1x16x16xf32>
    %11 = vector.shape_cast %10 : vector<1x16x16xf32> to vector<16x16xf32>
    %c0_15 = arith.constant 0 : index
    %c0_16 = arith.constant 0 : index
    %12 = vector.load %arg8[%c0_15, %c0_16] : memref<1x128xf32, #tpu.memory_space<vmem>>, vector<1x128xf32>
    %c0_17 = arith.constant 0 : index
    %c0_18 = arith.constant 0 : index
    %c0_19 = arith.constant 0 : index
    %13 = vector.load %arg6[%c0_17, %c0_18, %c0_19] : memref<3x128x128xf32, #tpu.memory_space<vmem>>, vector<1x128x128xf32>
    %14 = vector.shape_cast %13 : vector<1x128x128xf32> to vector<128x128xf32>
    %cst_20 = arith.constant dense<0.000000e+00> : vector<16x128xf32>
    %15 = tpu.matmul %7, %14, %cst_20 {dimension_numbers = #tpu.dot_dimension_numbers<[1], [0], [0], [1], [0, 0, 1, 1], [], []>} : vector<16x128xf32>, vector<128x128xf32>, vector<16x128xf32> -> vector<16x128xf32>
    %c0_21 = arith.constant 0 : index
    %c0_22 = arith.constant 0 : index
    %c0_23 = arith.constant 0 : index
    %16 = vector.load %arg7[%c0_21, %c0_22, %c0_23] : memref<3x128x128xf32, #tpu.memory_space<vmem>>, vector<1x128x128xf32>
    %17 = vector.shape_cast %16 : vector<1x128x128xf32> to vector<128x128xf32>
    %cst_24 = arith.constant dense<0.000000e+00> : vector<16x128xf32>
    %18 = tpu.matmul %5, %17, %cst_24 {dimension_numbers = #tpu.dot_dimension_numbers<[1], [0], [0], [1], [0, 0, 1, 1], [], []>} : vector<16x128xf32>, vector<128x128xf32>, vector<16x128xf32> -> vector<16x128xf32>
    %19 = arith.addf %15, %18 : vector<16x128xf32>
    %c1_25 = arith.constant 1 : index
    %c0_26 = arith.constant 0 : index
    %c0_27 = arith.constant 0 : index
    %20 = vector.load %arg6[%c1_25, %c0_26, %c0_27] : memref<3x128x128xf32, #tpu.memory_space<vmem>>, vector<1x128x128xf32>
    %21 = vector.shape_cast %20 : vector<1x128x128xf32> to vector<128x128xf32>
    %cst_28 = arith.constant dense<0.000000e+00> : vector<16x128xf32>
    %22 = tpu.matmul %7, %21, %cst_28 {dimension_numbers = #tpu.dot_dimension_numbers<[1], [0], [0], [1], [0, 0, 1, 1], [], []>} : vector<16x128xf32>, vector<128x128xf32>, vector<16x128xf32> -> vector<16x128xf32>
    %c1_29 = arith.constant 1 : index
    %c0_30 = arith.constant 0 : index
    %c0_31 = arith.constant 0 : index
    %23 = vector.load %arg7[%c1_29, %c0_30, %c0_31] : memref<3x128x128xf32, #tpu.memory_space<vmem>>, vector<1x128x128xf32>
    %24 = vector.shape_cast %23 : vector<1x128x128xf32> to vector<128x128xf32>
    %cst_32 = arith.constant dense<0.000000e+00> : vector<16x128xf32>
    %25 = tpu.matmul %5, %24, %cst_32 {dimension_numbers = #tpu.dot_dimension_numbers<[1], [0], [0], [1], [0, 0, 1, 1], [], []>} : vector<16x128xf32>, vector<128x128xf32>, vector<16x128xf32> -> vector<16x128xf32>
    %26 = arith.addf %22, %25 : vector<16x128xf32>
    %c2 = arith.constant 2 : index
    %c0_33 = arith.constant 0 : index
    %c0_34 = arith.constant 0 : index
    %27 = vector.load %arg6[%c2, %c0_33, %c0_34] : memref<3x128x128xf32, #tpu.memory_space<vmem>>, vector<1x128x128xf32>
    %28 = vector.shape_cast %27 : vector<1x128x128xf32> to vector<128x128xf32>
    %cst_35 = arith.constant dense<0.000000e+00> : vector<16x128xf32>
    %29 = tpu.matmul %7, %28, %cst_35 {dimension_numbers = #tpu.dot_dimension_numbers<[1], [0], [0], [1], [0, 0, 1, 1], [], []>} : vector<16x128xf32>, vector<128x128xf32>, vector<16x128xf32> -> vector<16x128xf32>
    %c2_36 = arith.constant 2 : index
    %c0_37 = arith.constant 0 : index
    %c0_38 = arith.constant 0 : index
    %30 = vector.load %arg7[%c2_36, %c0_37, %c0_38] : memref<3x128x128xf32, #tpu.memory_space<vmem>>, vector<1x128x128xf32>
    %31 = vector.shape_cast %30 : vector<1x128x128xf32> to vector<128x128xf32>
    %cst_39 = arith.constant dense<0.000000e+00> : vector<16x128xf32>
    %32 = tpu.matmul %5, %31, %cst_39 {dimension_numbers = #tpu.dot_dimension_numbers<[1], [0], [0], [1], [0, 0, 1, 1], [], []>} : vector<16x128xf32>, vector<128x128xf32>, vector<16x128xf32> -> vector<16x128xf32>
    %33 = arith.addf %29, %32 : vector<16x128xf32>
    %cst_40 = arith.constant dense<0.000000e+00> : vector<16x128xf32>
    %34 = tpu.matmul %9, %19, %cst_40 {dimension_numbers = #tpu.dot_dimension_numbers<[1], [0], [0], [1], [0, 0, 1, 1], [], []>} : vector<16x16xf32>, vector<16x128xf32>, vector<16x128xf32> -> vector<16x128xf32>
    %35 = arith.addf %26, %34 : vector<16x128xf32>
    %cst_41 = arith.constant dense<0.000000e+00> : vector<16x128xf32>
    %36 = tpu.matmul %11, %33, %cst_41 {dimension_numbers = #tpu.dot_dimension_numbers<[1], [0], [0], [1], [0, 0, 1, 1], [], []>} : vector<16x16xf32>, vector<16x128xf32>, vector<16x128xf32> -> vector<16x128xf32>
    %37 = arith.addf %35, %36 : vector<16x128xf32>
    %38 = vector.broadcast %12 : vector<1x128xf32> to vector<16x128xf32>
    %39 = arith.addf %37, %38 : vector<16x128xf32>
    %cst_42 = arith.constant 0.000000e+00 : f32
    %40 = vector.broadcast %cst_42 : f32 to vector<16x128xf32>
    %41 = arith.maximumf %39, %40 : vector<16x128xf32>
    %c0_43 = arith.constant 0 : index
    %c0_44 = arith.constant 0 : index
    %42 = vector.load %arg10[%c0_43, %c0_44] : memref<1x128xf32, #tpu.memory_space<vmem>>, vector<1x128xf32>
    %c0_45 = arith.constant 0 : index
    %c0_46 = arith.constant 0 : index
    %c0_47 = arith.constant 0 : index
    %43 = vector.load %arg9[%c0_45, %c0_46, %c0_47] : memref<3x128x128xf32, #tpu.memory_space<vmem>>, vector<1x128x128xf32>
    %44 = vector.shape_cast %43 : vector<1x128x128xf32> to vector<128x128xf32>
    %cst_48 = arith.constant dense<0.000000e+00> : vector<16x128xf32>
    %45 = tpu.matmul %41, %44, %cst_48 {dimension_numbers = #tpu.dot_dimension_numbers<[1], [0], [0], [1], [0, 0, 1, 1], [], []>} : vector<16x128xf32>, vector<128x128xf32>, vector<16x128xf32> -> vector<16x128xf32>
    %c1_49 = arith.constant 1 : index
    %c0_50 = arith.constant 0 : index
    %c0_51 = arith.constant 0 : index
    %46 = vector.load %arg9[%c1_49, %c0_50, %c0_51] : memref<3x128x128xf32, #tpu.memory_space<vmem>>, vector<1x128x128xf32>
    %47 = vector.shape_cast %46 : vector<1x128x128xf32> to vector<128x128xf32>
    %cst_52 = arith.constant dense<0.000000e+00> : vector<16x128xf32>
    %48 = tpu.matmul %41, %47, %cst_52 {dimension_numbers = #tpu.dot_dimension_numbers<[1], [0], [0], [1], [0, 0, 1, 1], [], []>} : vector<16x128xf32>, vector<128x128xf32>, vector<16x128xf32> -> vector<16x128xf32>
    %c2_53 = arith.constant 2 : index
    %c0_54 = arith.constant 0 : index
    %c0_55 = arith.constant 0 : index
    %49 = vector.load %arg9[%c2_53, %c0_54, %c0_55] : memref<3x128x128xf32, #tpu.memory_space<vmem>>, vector<1x128x128xf32>
    %50 = vector.shape_cast %49 : vector<1x128x128xf32> to vector<128x128xf32>
    %cst_56 = arith.constant dense<0.000000e+00> : vector<16x128xf32>
    %51 = tpu.matmul %41, %50, %cst_56 {dimension_numbers = #tpu.dot_dimension_numbers<[1], [0], [0], [1], [0, 0, 1, 1], [], []>} : vector<16x128xf32>, vector<128x128xf32>, vector<16x128xf32> -> vector<16x128xf32>
    %cst_57 = arith.constant dense<0.000000e+00> : vector<16x128xf32>
    %52 = tpu.matmul %9, %45, %cst_57 {dimension_numbers = #tpu.dot_dimension_numbers<[1], [0], [0], [1], [0, 0, 1, 1], [], []>} : vector<16x16xf32>, vector<16x128xf32>, vector<16x128xf32> -> vector<16x128xf32>
    %53 = arith.addf %48, %52 : vector<16x128xf32>
    %cst_58 = arith.constant dense<0.000000e+00> : vector<16x128xf32>
    %54 = tpu.matmul %11, %51, %cst_58 {dimension_numbers = #tpu.dot_dimension_numbers<[1], [0], [0], [1], [0, 0, 1, 1], [], []>} : vector<16x16xf32>, vector<16x128xf32>, vector<16x128xf32> -> vector<16x128xf32>
    %55 = arith.addf %53, %54 : vector<16x128xf32>
    %56 = vector.broadcast %42 : vector<1x128xf32> to vector<16x128xf32>
    %57 = arith.addf %55, %56 : vector<16x128xf32>
    %cst_59 = arith.constant 0.000000e+00 : f32
    %58 = vector.broadcast %cst_59 : f32 to vector<16x128xf32>
    %59 = arith.maximumf %57, %58 : vector<16x128xf32>
    %c0_60 = arith.constant 0 : index
    %c0_61 = arith.constant 0 : index
    %c0_62 = arith.constant 0 : index
    %60 = vector.load %arg11[%c0_60, %c0_61, %c0_62] : memref<1x16x128xf32, #tpu.memory_space<vmem>>, vector<1x16x128xf32>
    %61 = vector.shape_cast %60 : vector<1x16x128xf32> to vector<16x128xf32>
    %62 = vector.shape_cast %59 : vector<16x128xf32> to vector<1x16x128xf32>
    tpu.vector_store %arg11[%c0_60, %c0_61, %c0_62], %62 {strides = array<i32>} : memref<1x16x128xf32, #tpu.memory_space<vmem>>, vector<1x16x128xf32>,
    return
  }
  func.func @transform_0(%arg0: i32) -> (i32, i32, i32) {
    %c0_i32 = arith.constant 0 : i32
    %c0_i32_0 = arith.constant 0 : i32
    %c0_i32_1 = arith.constant 0 : i32
    return %arg0, %c0_i32, %c0_i32_0 : i32, i32, i32
  }
  func.func @transform_1(%arg0: i32) -> (i32, i32, i32) {
    %c0_i32 = arith.constant 0 : i32
    %c0_i32_0 = arith.constant 0 : i32
    %c0_i32_1 = arith.constant 0 : i32
    return %arg0, %c0_i32, %c0_i32_0 : i32, i32, i32
  }
  func.func @transform_2(%arg0: i32) -> (i32, i32) {
    %c0_i32 = arith.constant 0 : i32
    %c0_i32_0 = arith.constant 0 : i32
    %c0_i32_1 = arith.constant 0 : i32
    return %c0_i32, %c0_i32_0 : i32, i32
  }
  func.func @transform_3(%arg0: i32) -> (i32, i32) {
    %c0_i32 = arith.constant 0 : i32
    %c0_i32_0 = arith.constant 0 : i32
    %c0_i32_1 = arith.constant 0 : i32
    return %c0_i32, %c0_i32_0 : i32, i32
  }
  func.func @transform_4(%arg0: i32) -> (i32, i32, i32) {
    %c0_i32 = arith.constant 0 : i32
    %c0_i32_0 = arith.constant 0 : i32
    %c0_i32_1 = arith.constant 0 : i32
    %c0_i32_2 = arith.constant 0 : i32
    return %c0_i32, %c0_i32_0, %c0_i32_1 : i32, i32, i32
  }
  func.func @transform_5(%arg0: i32) -> (i32, i32, i32) {
    %c0_i32 = arith.constant 0 : i32
    %c0_i32_0 = arith.constant 0 : i32
    %c0_i32_1 = arith.constant 0 : i32
    %c0_i32_2 = arith.constant 0 : i32
    return %c0_i32, %c0_i32_0, %c0_i32_1 : i32, i32, i32
  }
  func.func @transform_6(%arg0: i32) -> (i32, i32, i32) {
    %c0_i32 = arith.constant 0 : i32
    %c0_i32_0 = arith.constant 0 : i32
    %c0_i32_1 = arith.constant 0 : i32
    %c0_i32_2 = arith.constant 0 : i32
    return %c0_i32, %c0_i32_0, %c0_i32_1 : i32, i32, i32
  }
  func.func @transform_7(%arg0: i32) -> (i32, i32) {
    %c0_i32 = arith.constant 0 : i32
    %c0_i32_0 = arith.constant 0 : i32
    %c0_i32_1 = arith.constant 0 : i32
    return %c0_i32, %c0_i32_0 : i32, i32
  }
  func.func @transform_8(%arg0: i32) -> (i32, i32, i32) {
    %c0_i32 = arith.constant 0 : i32
    %c0_i32_0 = arith.constant 0 : i32
    %c0_i32_1 = arith.constant 0 : i32
    %c0_i32_2 = arith.constant 0 : i32
    return %c0_i32, %c0_i32_0, %c0_i32_1 : i32, i32, i32
  }
  func.func @transform_9(%arg0: i32) -> (i32, i32) {
    %c0_i32 = arith.constant 0 : i32
    %c0_i32_0 = arith.constant 0 : i32
    %c0_i32_1 = arith.constant 0 : i32
    return %c0_i32, %c0_i32_0 : i32, i32
  }
  func.func @transform_10(%arg0: i32) -> (i32, i32, i32) {
    %c0_i32 = arith.constant 0 : i32
    %c0_i32_0 = arith.constant 0 : i32
    %c0_i32_1 = arith.constant 0 : i32
    return %arg0, %c0_i32, %c0_i32_0 : i32, i32, i32
  }
}

</mosaic_0001>

<llo_original>
// kernel: tile.18
$region0: #{tile.18}
  #allocation0 [shape = 's32[1]{0}', space=sflag, size = 0x4, scoped, tag = 'scoped memory for tile.18']
  %s0 = inlined_call_operand.vmem [shape: f32[8], index: 0, kind: input, shape index: {}]
  %s1 = inlined_call_operand.vmem [shape: f32[16,8], index: 1, kind: output, shape index: {}]
  // Predicated region
  $region2: #{tile.18} parent=0 // pred_check
    _
  $region3: #{tile.18} parent=0 // pred_check_branch
    %3 = sbr.rel (0) target = $region5
  $region4: #{tile.18} parent=0 // pred_region
    _
  $region5: #{tile.18} parent=0 // pred_fallthru
    _
  %v4 = vld [vmem:[%s0] ss:$0 sm:$0xff]
  %5 = vst [vmem:[%s1] sm:$0xff] %v4
  %s6 = scalar_lea.vmem %s1, 8
  %7 = vst [vmem:[%s6] sm:$0xff] %v4

// kernel: tile.19
$region0: #{tile.19}
  %s0 = inlined_call_operand.vmem [shape: f32[16,8], index: 0, kind: input, shape index: {}]
  %s1 = inlined_call_operand.vmem [shape: f32[1,128], index: 1, kind: output, shape index: {}]
  $region1: #{tile.19} parent=0
    #allocation0 [shape = 'u8[4096]{0}', space=vmem, size = 0x1000, scoped, tag = 'scoped mem for output reshape']
    %v2 = vld [vmem:[%s0] sm:$0x1]
    %vm3 = vcmask 64512
    %4 = vst.msk [vmem:[#allocation0] sm:$0x1] %vm3, %v2
    %s5 = scalar_lea.vmem %s0, 15
    %v6 = vld [vmem:[%s5] sm:$0x1]
    %7 = vrot.lane.b32.xlu0 %v6, 120
    %v8 = vpop.permute.xlu0 %7
    %vm9 = vcmask 1048512
    %10 = vst.msk [vmem:[#allocation0] sm:$0x1] %vm9, %v8
    %s11 = scalar_lea.vmem %s0, 14
    %v12 = vld [vmem:[%s11] sm:$0x1]
    %13 = vrot.lane.b32.xlu0 %v12, 112
    %v14 = vpop.permute.xlu0 %13
    %vm15 = vcmask 982912
    %16 = vst.msk [vmem:[#allocation0] sm:$0x1] %vm15, %v14
    %s17 = scalar_lea.vmem %s0, 13
    %v18 = vld [vmem:[%s17] sm:$0x1]
    %19 = vrot.lane.b32.xlu0 %v18, 104
    %v20 = vpop.permute.xlu0 %19
    %vm21 = vcmask 917312
    %22 = vst.msk [vmem:[#allocation0] sm:$0x1] %vm21, %v20
    %s23 = scalar_lea.vmem %s0, 12
    %v24 = vld [vmem:[%s23] sm:$0x1]
    %25 = vrot.lane.b32.xlu0 %v24, 96
    %v26 = vpop.permute.xlu0 %25
    %vm27 = vcmask 851712
    %28 = vst.msk [vmem:[#allocation0] sm:$0x1] %vm27, %v26
    %s29 = scalar_lea.vmem %s0, 11
    %v30 = vld [vmem:[%s29] sm:$0x1]
    %31 = vrot.lane.b32.xlu0 %v30, 88
    %v32 = vpop.permute.xlu0 %31
    %vm33 = vcmask 786112
    %34 = vst.msk [vmem:[#allocation0] sm:$0x1] %vm33, %v32
    %s35 = scalar_lea.vmem %s0, 10
    %v36 = vld [vmem:[%s35] sm:$0x1]
    %37 = vrot.lane.b32.xlu0 %v36, 80
    %v38 = vpop.permute.xlu0 %37
    %vm39 = vcmask 720512
    %40 = vst.msk [vmem:[#allocation0] sm:$0x1] %vm39, %v38
    %s41 = scalar_lea.vmem %s0, 9
    %v42 = vld [vmem:[%s41] sm:$0x1]
    %43 = vrot.lane.b32.xlu0 %v42, 72
    %v44 = vpop.permute.xlu0 %43
    %vm45 = vcmask 654912
    %46 = vst.msk [vmem:[#allocation0] sm:$0x1] %vm45, %v44
    %s47 = scalar_lea.vmem %s0, 8
    %v48 = vld [vmem:[%s47] sm:$0x1]
    %49 = vrot.lane.b32.xlu0 %v48, 64
    %v50 = vpop.permute.xlu0 %49
    %vm51 = vcmask 589312
    %52 = vst.msk [vmem:[#allocation0] sm:$0x1] %vm51, %v50
    %s53 = scalar_lea.vmem %s0, 7
    %v54 = vld [vmem:[%s53] sm:$0x1]
    %55 = vrot.lane.b32.xlu0 %v54, 56
    %v56 = vpop.permute.xlu0 %55
    %vm57 = vcmask 523712
    %58 = vst.msk [vmem:[#allocation0] sm:$0x1] %vm57, %v56
    %s59 = scalar_lea.vmem %s0, 6
    %v60 = vld [vmem:[%s59] sm:$0x1]
    %61 = vrot.lane.b32.xlu0 %v60, 48
    %v62 = vpop.permute.xlu0 %61
    %vm63 = vcmask 458112
    %64 = vst.msk [vmem:[#allocation0] sm:$0x1] %vm63, %v62
    %s65 = scalar_lea.vmem %s0, 5
    %v66 = vld [vmem:[%s65] sm:$0x1]
    %67 = vrot.lane.b32.xlu0 %v66, 40
    %v68 = vpop.permute.xlu0 %67
    %vm69 = vcmask 392512
    %70 = vst.msk [vmem:[#allocation0] sm:$0x1] %vm69, %v68
    %s71 = scalar_lea.vmem %s0, 4
    %v72 = vld [vmem:[%s71] sm:$0x1]
    %73 = vrot.lane.b32.xlu0 %v72, 32
    %v74 = vpop.permute.xlu0 %73
    %vm75 = vcmask 326912
    %76 = vst.msk [vmem:[#allocation0] sm:$0x1] %vm75, %v74
    %s77 = scalar_lea.vmem %s0, 3
    %v78 = vld [vmem:[%s77] sm:$0x1]
    %79 = vrot.lane.b32.xlu0 %v78, 24
    %v80 = vpop.permute.xlu0 %79
    %vm81 = vcmask 261312
    %82 = vst.msk [vmem:[#allocation0] sm:$0x1] %vm81, %v80
    %s83 = scalar_lea.vmem %s0, 2
    %v84 = vld [vmem:[%s83] sm:$0x1]
    %85 = vrot.lane.b32.xlu0 %v84, 16
    %v86 = vpop.permute.xlu0 %85
    %vm87 = vcmask 195712
    %88 = vst.msk [vmem:[#allocation0] sm:$0x1] %vm87, %v86
    %s89 = scalar_lea.vmem %s0, 1
    %v90 = vld [vmem:[%s89] sm:$0x1]
    %91 = vrot.lane.b32.xlu0 %v90, 8
    %v92 = vpop.permute.xlu0 %91
    %vm93 = vcmask 130112
    %94 = vst.msk [vmem:[#allocation0] sm:$0x1] %vm93, %v92
    %s96 = sshllo.u32 0, 1
    %v98 = vld [vmem:[#allocation0] sm:%s96]
    %s99 = sshllo.u32 0, 1
    %100 = vst [vmem:[%s1] sm:%s99] %v98

// kernel: up_forward.1
$region0: #{up_forward.1}
  #allocation0 [shape = 'u32[]', space=smem, size = 0x4, offset = 0x4, fixed_abs, tag = 'smem constant byte address 0x4 - core index']
  #allocation1 [shape = 'u32[144,128]{1,0:T(1,128)}', space=vmem, size = 0x12000, scoped, tag = 'internal scratch']
  %s0 = inlined_call_operand.vmem [shape: f32[2,8,64], index: 0, kind: input, shape index: {}]
  %s1 = inlined_call_operand.vmem [shape: f32[2,16,128], index: 1, kind: input, shape index: {}]
  %s2 = inlined_call_operand.vmem [shape: f32[16,8], index: 2, kind: input, shape index: {}]
  %s3 = inlined_call_operand.vmem [shape: f32[64,128], index: 3, kind: input, shape index: {}]
  %s4 = inlined_call_operand.vmem [shape: f32[2,16,16], index: 4, kind: input, shape index: {}]
  %s5 = inlined_call_operand.vmem [shape: f32[3,128,128], index: 5, kind: input, shape index: {}]
  %s6 = inlined_call_operand.vmem [shape: f32[3,128,128], index: 6, kind: input, shape index: {}]
  %s7 = inlined_call_operand.vmem [shape: f32[1,128], index: 7, kind: input, shape index: {}]
  %s8 = inlined_call_operand.vmem [shape: f32[3,128,128], index: 8, kind: input, shape index: {}]
  %s9 = inlined_call_operand.vmem [shape: f32[1,128], index: 9, kind: input, shape index: {}]
  %s10 = inlined_call_operand.vmem [shape: f32[2,16,128], index: 10, kind: output, shape index: {}]
  %s11 = sld [smem:[#allocation0]]
  $region73: #{up_forward.1} parent=0
    _
  %s13 = ssub.s32 1, %s11
  %s14 = scalar_select 0, %s13, %s11
  loop: start=0, step=1, limit=4
  $region2: #{up_forward.1} parent=0 // loop_pre_header
    _
  $region3: #{up_forward.1} parent=0 // loop_header
    %s16 = sphi 0, %s20
    %p17 = scmp.ge.s32.totalorder %s16, 4
    %s26 = sphi 0, %s28
    %s29 = sphi 0, %s26
    %s30 = sphi 0, %s29
    %s46 = sphi 0, %s30
    %s52 = sphi 0, %s54
    %s55 = sphi 0, %s52
    %s56 = sphi 0, %s55
    %s72 = sphi 0, %s56
    %s76 = sphi 0, %s76
    %s78 = sphi 0, %s76
    %s79 = sphi 0, %s78
    %s93 = sphi 0, %s79
    %s97 = sphi 0, %s97
    %s99 = sphi 0, %s97
    %s100 = sphi 0, %s99
    %s114 = sphi 0, %s100
    %s118 = sphi 0, %s118
    %s120 = sphi 0, %s118
    %s121 = sphi 0, %s120
    %s135 = sphi 0, %s121
    %s139 = sphi 0, %s139
    %s141 = sphi 0, %s139
    %s142 = sphi 0, %s141
    %s156 = sphi 0, %s142
    %s160 = sphi 0, %s160
    %s162 = sphi 0, %s160
    %s163 = sphi 0, %s162
    %s177 = sphi 0, %s163
    %s181 = sphi 0, %s181
    %s183 = sphi 0, %s181
    %s184 = sphi 0, %s183
    %s198 = sphi 0, %s184
    %s202 = sphi 0, %s202
    %s204 = sphi 0, %s202
    %s205 = sphi 0, %s204
    %s219 = sphi 0, %s205
    %s223 = sphi 0, %s223
    %s225 = sphi 0, %s223
    %s226 = sphi 0, %s225
    %s240 = sphi 0, %s226
    %s246 = sphi 0, %s248
    %s249 = sphi 0, %s246
    %s250 = sphi 0, %s249
    %s266 = sphi 0, %s250
  $region4: #{up_forward.1} parent=0 // loop_header_branch
    %19 = sbr.rel (%p17) target = $region8
  $region5: #{up_forward.1} parent=0 // loop_body
    %s21 = ssub.s32 %s16, 1
    %s22 = ssub.s32 %s16, 2
    %s23 = sadd.s32 %s16, 1
    %s24 = ssub.s32 %s16, %s23
    %p25 = scmp.eq.s32.totalorder %s24, 0
    %s27 = sadd.s32 %s26, 1
    %s28 = scalar_select %p25, %s26, %s27
    %p31 = pneg %p25
    %p32 = scmp.eq.s32.totalorder %s16, 1
    %p33 = por %p31, %p32
    %p34 = scmp.ne.s32.totalorder %s26, %s29
    %p35 = scmp.eq.s32.totalorder %s16, 0
    %p36 = por %p34, %p35
    %p37 = scmp.ne.s32.totalorder %s26, %s29
    %p38 = scmp.eq.s32.totalorder %s21, 1
    %p39 = por %p37, %p38
    %p40 = scmp.ne.s32.totalorder %s29, %s30
    %p41 = scmp.eq.s32.totalorder %s21, 0
    %p42 = por %p40, %p41
    %p43 = scmp.ne.s32.totalorder %s29, %s30
    %p44 = scmp.eq.s32.totalorder %s22, 1
    %p45 = por %p43, %p44
    %p47 = scmp.ne.s32.totalorder %s30, %s46
    %p48 = scmp.eq.s32.totalorder %s22, 0
    %p49 = por %p47, %p48
    %s50 = ssub.s32 %s16, %s23
    %p51 = scmp.eq.s32.totalorder %s50, 0
    %s53 = sadd.s32 %s52, 1
    %s54 = scalar_select %p51, %s52, %s53
    %p57 = pneg %p51
    %p58 = scmp.eq.s32.totalorder %s16, 1
    %p59 = por %p57, %p58
    %p60 = scmp.ne.s32.totalorder %s52, %s55
    %p61 = scmp.eq.s32.totalorder %s16, 0
    %p62 = por %p60, %p61
    %p63 = scmp.ne.s32.totalorder %s52, %s55
    %p64 = scmp.eq.s32.totalorder %s21, 1
    %p65 = por %p63, %p64
    %p66 = scmp.ne.s32.totalorder %s55, %s56
    %p67 = scmp.eq.s32.totalorder %s21, 0
    %p68 = por %p66, %p67
    %p69 = scmp.ne.s32.totalorder %s55, %s56
    %p70 = scmp.eq.s32.totalorder %s22, 1
    %p71 = por %p69, %p70
    %p73 = scmp.ne.s32.totalorder %s56, %s72
    %p74 = scmp.eq.s32.totalorder %s22, 0
    %p75 = por %p73, %p74
    %s77 = sadd.s32 %s76, 1
    %p80 = scmp.eq.s32.totalorder %s16, 1
    %p81 = scmp.ne.s32.totalorder %s76, %s78
    %p82 = scmp.eq.s32.totalorder %s16, 0
    %p83 = por %p81, %p82
    %p84 = scmp.ne.s32.totalorder %s76, %s78
    %p85 = scmp.eq.s32.totalorder %s21, 1
    %p86 = por %p84, %p85
    %p87 = scmp.ne.s32.totalorder %s78, %s79
    %p88 = scmp.eq.s32.totalorder %s21, 0
    %p89 = por %p87, %p88
    %p90 = scmp.ne.s32.totalorder %s78, %s79
    %p91 = scmp.eq.s32.totalorder %s22, 1
    %p92 = por %p90, %p91
    %p94 = scmp.ne.s32.totalorder %s79, %s93
    %p95 = scmp.eq.s32.totalorder %s22, 0
    %p96 = por %p94, %p95
    %s98 = sadd.s32 %s97, 1
    %p101 = scmp.eq.s32.totalorder %s16, 1
    %p102 = scmp.ne.s32.totalorder %s97, %s99
    %p103 = scmp.eq.s32.totalorder %s16, 0
    %p104 = por %p102, %p103
    %p105 = scmp.ne.s32.totalorder %s97, %s99
    %p106 = scmp.eq.s32.totalorder %s21, 1
    %p107 = por %p105, %p106
    %p108 = scmp.ne.s32.totalorder %s99, %s100
    %p109 = scmp.eq.s32.totalorder %s21, 0
    %p110 = por %p108, %p109
    %p111 = scmp.ne.s32.totalorder %s99, %s100
    %p112 = scmp.eq.s32.totalorder %s22, 1
    %p113 = por %p111, %p112
    %p115 = scmp.ne.s32.totalorder %s100, %s114
    %p116 = scmp.eq.s32.totalorder %s22, 0
    %p117 = por %p115, %p116
    %s119 = sadd.s32 %s118, 1
    %p122 = scmp.eq.s32.totalorder %s16, 1
    %p123 = scmp.ne.s32.totalorder %s118, %s120
    %p124 = scmp.eq.s32.totalorder %s16, 0
    %p125 = por %p123, %p124
    %p126 = scmp.ne.s32.totalorder %s118, %s120
    %p127 = scmp.eq.s32.totalorder %s21, 1
    %p128 = por %p126, %p127
    %p129 = scmp.ne.s32.totalorder %s120, %s121
    %p130 = scmp.eq.s32.totalorder %s21, 0
    %p131 = por %p129, %p130
    %p132 = scmp.ne.s32.totalorder %s120, %s121
    %p133 = scmp.eq.s32.totalorder %s22, 1
    %p134 = por %p132, %p133
    %p136 = scmp.ne.s32.totalorder %s121, %s135
    %p137 = scmp.eq.s32.totalorder %s22, 0
    %p138 = por %p136, %p137
    %s140 = sadd.s32 %s139, 1
    %p143 = scmp.eq.s32.totalorder %s16, 1
    %p144 = scmp.ne.s32.totalorder %s139, %s141
    %p145 = scmp.eq.s32.totalorder %s16, 0
    %p146 = por %p144, %p145
    %p147 = scmp.ne.s32.totalorder %s139, %s141
    %p148 = scmp.eq.s32.totalorder %s21, 1
    %p149 = por %p147, %p148
    %p150 = scmp.ne.s32.totalorder %s141, %s142
    %p151 = scmp.eq.s32.totalorder %s21, 0
    %p152 = por %p150, %p151
    %p153 = scmp.ne.s32.totalorder %s141, %s142
    %p154 = scmp.eq.s32.totalorder %s22, 1
    %p155 = por %p153, %p154
    %p157 = scmp.ne.s32.totalorder %s142, %s156
    %p158 = scmp.eq.s32.totalorder %s22, 0
    %p159 = por %p157, %p158
    %s161 = sadd.s32 %s160, 1
    %p164 = scmp.eq.s32.totalorder %s16, 1
    %p165 = scmp.ne.s32.totalorder %s160, %s162
    %p166 = scmp.eq.s32.totalorder %s16, 0
    %p167 = por %p165, %p166
    %p168 = scmp.ne.s32.totalorder %s160, %s162
    %p169 = scmp.eq.s32.totalorder %s21, 1
    %p170 = por %p168, %p169
    %p171 = scmp.ne.s32.totalorder %s162, %s163
    %p172 = scmp.eq.s32.totalorder %s21, 0
    %p173 = por %p171, %p172
    %p174 = scmp.ne.s32.totalorder %s162, %s163
    %p175 = scmp.eq.s32.totalorder %s22, 1
    %p176 = por %p174, %p175
    %p178 = scmp.ne.s32.totalorder %s163, %s177
    %p179 = scmp.eq.s32.totalorder %s22, 0
    %p180 = por %p178, %p179
    %s182 = sadd.s32 %s181, 1
    %p185 = scmp.eq.s32.totalorder %s16, 1
    %p186 = scmp.ne.s32.totalorder %s181, %s183
    %p187 = scmp.eq.s32.totalorder %s16, 0
    %p188 = por %p186, %p187
    %p189 = scmp.ne.s32.totalorder %s181, %s183
    %p190 = scmp.eq.s32.totalorder %s21, 1
    %p191 = por %p189, %p190
    %p192 = scmp.ne.s32.totalorder %s183, %s184
    %p193 = scmp.eq.s32.totalorder %s21, 0
    %p194 = por %p192, %p193
    %p195 = scmp.ne.s32.totalorder %s183, %s184
    %p196 = scmp.eq.s32.totalorder %s22, 1
    %p197 = por %p195, %p196
    %p199 = scmp.ne.s32.totalorder %s184, %s198
    %p200 = scmp.eq.s32.totalorder %s22, 0
    %p201 = por %p199, %p200
    %s203 = sadd.s32 %s202, 1
    %p206 = scmp.eq.s32.totalorder %s16, 1
    %p207 = scmp.ne.s32.totalorder %s202, %s204
    %p208 = scmp.eq.s32.totalorder %s16, 0
    %p209 = por %p207, %p208
    %p210 = scmp.ne.s32.totalorder %s202, %s204
    %p211 = scmp.eq.s32.totalorder %s21, 1
    %p212 = por %p210, %p211
    %p213 = scmp.ne.s32.totalorder %s204, %s205
    %p214 = scmp.eq.s32.totalorder %s21, 0
    %p215 = por %p213, %p214
    %p216 = scmp.ne.s32.totalorder %s204, %s205
    %p217 = scmp.eq.s32.totalorder %s22, 1
    %p218 = por %p216, %p217
    %p220 = scmp.ne.s32.totalorder %s205, %s219
    %p221 = scmp.eq.s32.totalorder %s22, 0
    %p222 = por %p220, %p221
    %s224 = sadd.s32 %s223, 1
    %p227 = scmp.eq.s32.totalorder %s16, 1
    %p228 = scmp.ne.s32.totalorder %s223, %s225
    %p229 = scmp.eq.s32.totalorder %s16, 0
    %p230 = por %p228, %p229
    %p231 = scmp.ne.s32.totalorder %s223, %s225
    %p232 = scmp.eq.s32.totalorder %s21, 1
    %p233 = por %p231, %p232
    %p234 = scmp.ne.s32.totalorder %s225, %s226
    %p235 = scmp.eq.s32.totalorder %s21, 0
    %p236 = por %p234, %p235
    %p237 = scmp.ne.s32.totalorder %s225, %s226
    %p238 = scmp.eq.s32.totalorder %s22, 1
    %p239 = por %p237, %p238
    %p241 = scmp.ne.s32.totalorder %s226, %s240
    %p242 = scmp.eq.s32.totalorder %s22, 0
    %p243 = por %p241, %p242
    %s244 = ssub.s32 %s16, %s23
    %p245 = scmp.eq.s32.totalorder %s244, 0
    %s247 = sadd.s32 %s246, 1
    %s248 = scalar_select %p245, %s246, %s247
    %p251 = pneg %p245
    %p252 = scmp.eq.s32.totalorder %s16, 1
    %p253 = por %p251, %p252
    %p254 = scmp.ne.s32.totalorder %s246, %s249
    %p255 = scmp.eq.s32.totalorder %s16, 0
    %p256 = por %p254, %p255
    %p257 = scmp.ne.s32.totalorder %s246, %s249
    %p258 = scmp.eq.s32.totalorder %s21, 1
    %p259 = por %p257, %p258
    %p260 = scmp.ne.s32.totalorder %s249, %s250
    %p261 = scmp.eq.s32.totalorder %s21, 0
    %p262 = por %p260, %p261
    %p263 = scmp.ne.s32.totalorder %s249, %s250
    %p264 = scmp.eq.s32.totalorder %s22, 1
    %p265 = por %p263, %p264
    %p267 = scmp.ne.s32.totalorder %s250, %s266
    %p268 = scmp.eq.s32.totalorder %s22, 0
    %p269 = por %p267, %p268
    %p270 = scmp.le.s32.totalorder 1, %s16
    %p271 = scmp.lt.s32.totalorder %s16, 3
    %p272 = pnand %p270, %p271
    %p273 = pneg %p272
    // Predicated region
    $region9: #{up_forward.1} parent=5 // pred_check
      _
    $region10: #{up_forward.1} parent=5 // pred_check_branch
      %275 = sbr.rel (%p272) target = $region12
    $region11: #{up_forward.1} parent=5 // pred_region
      %s276 = ssub.s32 %s16, 1
      // Predicated region
      $region13: #{up_forward.1} parent=11 // pred_check
        %p277 = pneg %p89
      $region14: #{up_forward.1} parent=11 // pred_check_branch
        %279 = sbr.rel (%p277) target = $region16
      $region15: #{up_forward.1} parent=11 // pred_region
        _
      $region16: #{up_forward.1} parent=11 // pred_fallthru
        _
      // Predicated region
      $region17: #{up_forward.1} parent=11 // pred_check
        %p280 = pneg %p110
      $region18: #{up_forward.1} parent=11 // pred_check_branch
        %282 = sbr.rel (%p280) target = $region20
      $region19: #{up_forward.1} parent=11 // pred_region
        _
      $region20: #{up_forward.1} parent=11 // pred_fallthru
        _
      // Predicated region
      $region21: #{up_forward.1} parent=11 // pred_check
        %p283 = pneg %p131
      $region22: #{up_forward.1} parent=11 // pred_check_branch
        %285 = sbr.rel (%p283) target = $region24
      $region23: #{up_forward.1} parent=11 // pred_region
        _
      $region24: #{up_forward.1} parent=11 // pred_fallthru
        _
      // Predicated region
      $region25: #{up_forward.1} parent=11 // pred_check
        %p286 = pneg %p152
      $region26: #{up_forward.1} parent=11 // pred_check_branch
        %288 = sbr.rel (%p286) target = $region28
      $region27: #{up_forward.1} parent=11 // pred_region
        _
      $region28: #{up_forward.1} parent=11 // pred_fallthru
        _
      // Predicated region
      $region29: #{up_forward.1} parent=11 // pred_check
        %p289 = pneg %p173
      $region30: #{up_forward.1} parent=11 // pred_check_branch
        %291 = sbr.rel (%p289) target = $region32
      $region31: #{up_forward.1} parent=11 // pred_region
        _
      $region32: #{up_forward.1} parent=11 // pred_fallthru
        _
      // Predicated region
      $region33: #{up_forward.1} parent=11 // pred_check
        %p292 = pneg %p194
      $region34: #{up_forward.1} parent=11 // pred_check_branch
        %294 = sbr.rel (%p292) target = $region36
      $region35: #{up_forward.1} parent=11 // pred_region
        _
      $region36: #{up_forward.1} parent=11 // pred_fallthru
        _
      // Predicated region
      $region37: #{up_forward.1} parent=11 // pred_check
        %p295 = pneg %p215
      $region38: #{up_forward.1} parent=11 // pred_check_branch
        %297 = sbr.rel (%p295) target = $region40
      $region39: #{up_forward.1} parent=11 // pred_region
        _
      $region40: #{up_forward.1} parent=11 // pred_fallthru
        _
      // Predicated region
      $region41: #{up_forward.1} parent=11 // pred_check
        %p298 = pneg %p236
      $region42: #{up_forward.1} parent=11 // pred_check_branch
        %300 = sbr.rel (%p298) target = $region44
      $region43: #{up_forward.1} parent=11 // pred_region
        _
      $region44: #{up_forward.1} parent=11 // pred_fallthru
        _
    $region12: #{up_forward.1} parent=5 // pred_fallthru
      _
    %p301 = scmp.lt.s32.totalorder %s16, 2
    // Predicated region
    $region45: #{up_forward.1} parent=5 // pred_check
      %p302 = pneg %p301
    $region46: #{up_forward.1} parent=5 // pred_check_branch
      %304 = sbr.rel (%p302) target = $region48
    $region47: #{up_forward.1} parent=5 // pred_region
      // Predicated region
      $region49: #{up_forward.1} parent=47 // pred_check
        %p305 = pneg %p36
      $region50: #{up_forward.1} parent=47 // pred_check_branch
        %307 = sbr.rel (%p305) target = $region52
      $region51: #{up_forward.1} parent=47 // pred_region
        %p308 = scmp.lt.s32.totalorder %s16, 1
        %s309 = scalar_select %p308, %s16, 1
        %s310 = smul.addr %s309, 8
        %s311 = scalar_lea.vmem %s0, %s310
      $region52: #{up_forward.1} parent=47 // pred_fallthru
        _
      // Predicated region
      $region53: #{up_forward.1} parent=47 // pred_check
        %p312 = pneg %p62
      $region54: #{up_forward.1} parent=47 // pred_check_branch
        %314 = sbr.rel (%p312) target = $region56
      $region55: #{up_forward.1} parent=47 // pred_region
        %p315 = scmp.lt.s32.totalorder %s16, 1
        %s316 = scalar_select %p315, %s16, 1
        %s317 = smul.addr %s316, 2
        %s318 = smul.addr %s317, 8
        %s319 = scalar_lea.vmem %s1, %s318
      $region56: #{up_forward.1} parent=47 // pred_fallthru
        _
    $region48: #{up_forward.1} parent=5 // pred_fallthru
      _
    %p320 = scmp.le.s32.totalorder 1, %s16
    %p321 = scmp.lt.s32.totalorder %s16, 3
    %p322 = pnand %p320, %p321
    %p323 = pneg %p322
    // Predicated region
    $region57: #{up_forward.1} parent=5 // pred_check
      _
    $region58: #{up_forward.1} parent=5 // pred_check_branch
      %325 = sbr.rel (%p322) target = $region60
    $region59: #{up_forward.1} parent=5 // pred_region
      %s326 = ssub.s32 %s16, 1
      %p327 = scmp.lt.s32.totalorder %s21, 1
      %s328 = scalar_select %p327, %s21, 1
      %s329 = smul.addr %s328, 8
      %s330 = scalar_lea.vmem %s0, %s329
      %p331 = pneg %p42
      %p332 = pneg %p39
      %p333 = scmp.lt.s32.totalorder %s21, 1
      %s334 = scalar_select %p333, %s21, 1
      %s335 = smul.addr %s334, 2
      %s336 = smul.addr %s335, 8
      %s337 = scalar_lea.vmem %s1, %s336
      %p338 = pneg %p68
      %p339 = pneg %p65
      %p340 = pneg %p89
      %p341 = pneg %p86
      %p342 = pneg %p110
      %p343 = pneg %p107
      %p344 = pneg %p131
      %p345 = pneg %p128
      %p346 = pneg %p152
      %p347 = pneg %p149
      %p348 = pneg %p173
      %p349 = pneg %p170
      %p350 = pneg %p194
      %p351 = pneg %p191
      %p352 = pneg %p215
      %p353 = pneg %p212
      %p354 = pneg %p236
      %p355 = pneg %p233
      %p356 = pneg %p262
      %p357 = pneg %p259
      %p358 = scmp.lt.s32.totalorder %s21, 1
      %s359 = scalar_select %p358, %s21, 1
      %s360 = smul.addr %s359, 2
      %s361 = smul.addr %s360, 8
      %s362 = scalar_lea.vmem %s10, %s361
      %p363 = scmp.lt.s32.totalorder %s21, 1
      %s364 = scalar_select %p363, %s21, 1
      %s365 = smul.addr %s364, 8
      %s366 = scalar_lea.vmem %s0, %s365
      %p367 = scmp.lt.s32.totalorder %s21, 1
      %s368 = scalar_select %p367, %s21, 1
      %s369 = smul.addr %s368, 2
      %s370 = smul.addr %s369, 8
      %s371 = scalar_lea.vmem %s1, %s370
      %p372 = scmp.lt.s32.totalorder %s21, 1
      %s373 = scalar_select %p372, %s21, 1
      %s374 = smul.addr %s373, 2
      %s375 = smul.addr %s374, 8
      %s376 = scalar_lea.vmem %s10, %s375
      %v377 = vld [vmem:[%s366] sm:$0xff]
      %v378 = vld [vmem:[%s3] sm:$0xff]
      %v379 = vld [vmem:[%s3 + $0x8] sm:$0xff]
      %v380 = vld [vmem:[%s3 + $0x10] sm:$0xff]
      %v381 = vld [vmem:[%s3 + $0x18] sm:$0xff]
      %v382 = vld [vmem:[%s3 + $0x20] sm:$0xff]
      %v383 = vld [vmem:[%s3 + $0x28] sm:$0xff]
      %v384 = vld [vmem:[%s3 + $0x30] sm:$0xff]
      %v385 = vld [vmem:[%s3 + $0x38] sm:$0xff]
      %vm386 = vcmask 523264
      %v388 = vsel %vm386, %v377, 0
      %390 = vmatprep.subr.mxu0 0.0
      %391 = vmatpush1.msra.mxu0 %v378
      %392 = vmatprep.subr.mxu0 0.0
      %393 = vmatpush1.msra.mxu0 %v379
      %394 = vmatprep.subr.mxu0 0.0
      %395 = vmatpush1.msra.mxu0 %v380
      %396 = vmatprep.subr.mxu0 0.0
      %397 = vmatpush1.msra.mxu0 %v381
      %398 = vmatprep.subr.mxu0 0.0
      %399 = vmatpush1.msra.mxu0 %v382
      %400 = vmatprep.subr.mxu0 0.0
      %401 = vmatpush1.msra.mxu0 %v383
      %402 = vmatprep.subr.mxu0 0.0
      %403 = vmatpush1.msra.mxu0 %v384
      %404 = vmatprep.subr.mxu0 0.0
      %405 = vmatpush1.msra.mxu0 %v385
      %406 = vmatprep.subr.mxu0 0.0
      %407 = vmatpush1.msra.mxu0 0.0
      %408 = vmatprep.subr.mxu0 0.0
      %409 = vmatpush1.msra.mxu0 0.0
      %410 = vmatprep.subr.mxu0 0.0
      %411 = vmatpush1.msra.mxu0 0.0
      %412 = vmatprep.subr.mxu0 0.0
      %413 = vmatpush1.msra.mxu0 0.0
      %414 = vmatprep.subr.mxu0 0.0
      %415 = vmatpush1.msra.mxu0 0.0
      %416 = vmatprep.subr.mxu0 0.0
      %417 = vmatpush1.msra.mxu0 0.0
      %418 = vmatprep.subr.mxu0 0.0
      %419 = vmatpush1.msra.mxu0 0.0
      %420 = vmatprep.subr.mxu0 0.0
      %421 = vmatpush1.msra.mxu0 0.0
      %422 = vmatprep.subr.mxu0 0.0
      %423 = vmatpush1.msra.mxu0 0.0
      %424 = vmatprep.subr.mxu0 0.0
      %425 = vmatpush1.msra.mxu0 0.0
      %426 = vmatprep.subr.mxu0 0.0
      %427 = vmatpush1.msra.mxu0 0.0
      %428 = vmatprep.subr.mxu0 0.0
      %429 = vmatpush1.msra.mxu0 0.0
      %430 = vmatprep.subr.mxu0 0.0
      %431 = vmatpush1.msra.mxu0 0.0
      %432 = vmatprep.subr.mxu0 0.0
      %433 = vmatpush1.msra.mxu0 0.0
      %434 = vmatprep.subr.mxu0 0.0
      %435 = vmatpush1.msra.mxu0 0.0
      %436 = vmatprep.subr.mxu0 0.0
      %437 = vmatpush1.msra.mxu0 0.0
      %438 = vmatprep.subr.mxu0 0.0
      %439 = vmatpush1.msra.mxu0 0.0
      %440 = vmatprep.subr.mxu0 0.0
      %441 = vmatpush1.msra.mxu0 0.0
      %442 = vmatprep.subr.mxu0 0.0
      %443 = vmatpush1.msra.mxu0 0.0
      %444 = vmatprep.subr.mxu0 0.0
      %445 = vmatpush1.msra.mxu0 0.0
      %446 = vmatprep.subr.mxu0 0.0
      %447 = vmatpush1.msra.mxu0 0.0
      %448 = vmatprep.subr.mxu0 0.0
      %449 = vmatpush1.msra.mxu0 0.0
      %450 = vmatprep.subr.mxu0 0.0
      %451 = vmatpush1.msra.mxu0 0.0
      %452 = vmatprep.subr.mxu0 0.0
      %453 = vmatpush1.msra.mxu0 0.0
      %454 = vmatprep.mubr.f32.mxu0 0.0
      %455 = vmatmul.mubr.f32.gmra.mrb[0].mxu0 %v388
      %v456 = vpop.f32.mrb[0].mxu0
      %v457 = vadd.f32 0.0, %v456
      %v458 = vpop.f32.mrb[0].mxu0
      %459 = vdwg.mxu0
      %v460 = vld [vmem:[%s2] sm:$0xff]
      %v461 = vld [vmem:[%s2 + $0x8] sm:$0xff]
      %vm462 = vcmask 64512
      %v464 = vsel %vm462, %v460, 0
      %v467 = vsel %vm462, %v461, 0
      %469 = vmatprep.subr.mxu0 0.0
      %470 = vmatpush1.msra.mxu0 %v457
      %471 = vmatprep.subr.mxu0 0.0
      %472 = vmatpush1.msra.mxu0 0.0
      %473 = vmatprep.subr.mxu0 0.0
      %474 = vmatpush1.msra.mxu0 0.0
      %475 = vmatprep.subr.mxu0 0.0
      %476 = vmatpush1.msra.mxu0 0.0
      %477 = vmatprep.subr.mxu0 0.0
      %478 = vmatpush1.msra.mxu0 0.0
      %479 = vmatprep.subr.mxu0 0.0
      %480 = vmatpush1.msra.mxu0 0.0
      %481 = vmatprep.subr.mxu0 0.0
      %482 = vmatpush1.msra.mxu0 0.0
      %483 = vmatprep.subr.mxu0 0.0
      %484 = vmatpush1.msra.mxu0 0.0
      %485 = vmatprep.subr.mxu0 0.0
      %486 = vmatpush1.msra.mxu0 0.0
      %487 = vmatprep.subr.mxu0 0.0
      %488 = vmatpush1.msra.mxu0 0.0
      %489 = vmatprep.subr.mxu0 0.0
      %490 = vmatpush1.msra.mxu0 0.0
      %491 = vmatprep.subr.mxu0 0.0
      %492 = vmatpush1.msra.mxu0 0.0
      %493 = vmatprep.subr.mxu0 0.0
      %494 = vmatpush1.msra.mxu0 0.0
      %495 = vmatprep.subr.mxu0 0.0
      %496 = vmatpush1.msra.mxu0 0.0
      %497 = vmatprep.subr.mxu0 0.0
      %498 = vmatpush1.msra.mxu0 0.0
      %499 = vmatprep.subr.mxu0 0.0
      %500 = vmatpush1.msra.mxu0 0.0
      %501 = vmatprep.subr.mxu0 0.0
      %502 = vmatpush1.msra.mxu0 0.0
      %503 = vmatprep.subr.mxu0 0.0
      %504 = vmatpush1.msra.mxu0 0.0
      %505 = vmatprep.subr.mxu0 0.0
      %506 = vmatpush1.msra.mxu0 0.0
      %507 = vmatprep.subr.mxu0 0.0
      %508 = vmatpush1.msra.mxu0 0.0
      %509 = vmatprep.subr.mxu0 0.0
      %510 = vmatpush1.msra.mxu0 0.0
      %511 = vmatprep.subr.mxu0 0.0
      %512 = vmatpush1.msra.mxu0 0.0
      %513 = vmatprep.subr.mxu0 0.0
      %514 = vmatpush1.msra.mxu0 0.0
      %515 = vmatprep.subr.mxu0 0.0
      %516 = vmatpush1.msra.mxu0 0.0
      %517 = vmatprep.subr.mxu0 0.0
      %518 = vmatpush1.msra.mxu0 0.0
      %519 = vmatprep.subr.mxu0 0.0
      %520 = vmatpush1.msra.mxu0 0.0
      %521 = vmatprep.subr.mxu0 0.0
      %522 = vmatpush1.msra.mxu0 0.0
      %523 = vmatprep.subr.mxu0 0.0
      %524 = vmatpush1.msra.mxu0 0.0
      %525 = vmatprep.subr.mxu0 0.0
      %526 = vmatpush1.msra.mxu0 0.0
      %527 = vmatprep.subr.mxu0 0.0
      %528 = vmatpush1.msra.mxu0 0.0
      %529 = vmatprep.subr.mxu0 0.0
      %530 = vmatpush1.msra.mxu0 0.0
      %531 = vmatprep.subr.mxu0 0.0
      %532 = vmatpush1.msra.mxu0 0.0
      %533 = vmatprep.mubr.f32.mxu0 0.0
      %534 = vmatmul.mubr.f32.gmra.mrb[0].mxu0 %v464
      %v535 = vpop.f32.mrb[0].mxu0
      %v536 = vadd.f32 0.0, %v535
      %v537 = vpop.f32.mrb[0].mxu0
      %538 = vmatprep.mubr.f32.mxu0 0.0
      %539 = vmatmul.mubr.f32.gmra.mrb[0].mxu0 %v467
      %v540 = vpop.f32.mrb[0].mxu0
      %v541 = vadd.f32 0.0, %v540
      %v542 = vpop.f32.mrb[0].mxu0
      %543 = vdwg.mxu0
      %v544 = vld [vmem:[%s371] sm:$0xff]
      %v545 = vld [vmem:[%s371 + $0x8] sm:$0xff]
      %v546 = vld [vmem:[%s4] sm:$0xff]
      %v547 = vld [vmem:[%s4 + $0x8] sm:$0xff]
      %s548 = scalar_lea.vmem %s4, 16
      %v549 = vld [vmem:[%s548] sm:$0xff]
      %v550 = vld [vmem:[%s548 + $0x8] sm:$0xff]
      %v551 = vld [vmem:[%s7] sm:$0x1]
      %v552 = vld [vmem:[%s5] sm:$0xff]
      %v553 = vld [vmem:[%s5 + $0x8] sm:$0xff]
      %v554 = vld [vmem:[%s5 + $0x10] sm:$0xff]
      %v555 = vld [vmem:[%s5 + $0x18] sm:$0xff]
      %v556 = vld [vmem:[%s5 + $0x20] sm:$0xff]
      %v557 = vld [vmem:[%s5 + $0x28] sm:$0xff]
      %v558 = vld [vmem:[%s5 + $0x30] sm:$0xff]
      %v559 = vld [vmem:[%s5 + $0x38] sm:$0xff]
      %v560 = vld [vmem:[%s5 + $0x40] sm:$0xff]
      %v561 = vld [vmem:[%s5 + $0x48] sm:$0xff]
      %v562 = vld [vmem:[%s5 + $0x50] sm:$0xff]
      %v563 = vld [vmem:[%s5 + $0x58] sm:$0xff]
      %v564 = vld [vmem:[%s5 + $0x60] sm:$0xff]
      %v565 = vld [vmem:[%s5 + $0x68] sm:$0xff]
      %v566 = vld [vmem:[%s5 + $0x70] sm:$0xff]
      %v567 = vld [vmem:[%s5 + $0x78] sm:$0xff]
      %v568 = vld [vmem:[%s6] sm:$0xff]
      %v569 = vld [vmem:[%s6 + $0x8] sm:$0xff]
      %v570 = vld [vmem:[%s6 + $0x10] sm:$0xff]
      %v571 = vld [vmem:[%s6 + $0x18] sm:$0xff]
      %v572 = vld [vmem:[%s6 + $0x20] sm:$0xff]
      %v573 = vld [vmem:[%s6 + $0x28] sm:$0xff]
      %v574 = vld [vmem:[%s6 + $0x30] sm:$0xff]
      %v575 = vld [vmem:[%s6 + $0x38] sm:$0xff]
      %v576 = vld [vmem:[%s6 + $0x40] sm:$0xff]
      %v577 = vld [vmem:[%s6 + $0x48] sm:$0xff]
      %v578 = vld [vmem:[%s6 + $0x50] sm:$0xff]
      %v579 = vld [vmem:[%s6 + $0x58] sm:$0xff]
      %v580 = vld [vmem:[%s6 + $0x60] sm:$0xff]
      %v581 = vld [vmem:[%s6 + $0x68] sm:$0xff]
      %v582 = vld [vmem:[%s6 + $0x70] sm:$0xff]
      %v583 = vld [vmem:[%s6 + $0x78] sm:$0xff]
      %584 = vmatprep.subr.mxu0 0.0
      %585 = vmatpush1.msra.mxu0 %v568
      %586 = vmatprep.subr.mxu0 0.0
      %587 = vmatpush1.msra.mxu0 %v569
      %588 = vmatprep.subr.mxu0 0.0
      %589 = vmatpush1.msra.mxu0 %v570
      %590 = vmatprep.subr.mxu0 0.0
      %591 = vmatpush1.msra.mxu0 %v571
      %592 = vmatprep.subr.mxu0 0.0
      %593 = vmatpush1.msra.mxu0 %v572
      %594 = vmatprep.subr.mxu0 0.0
      %595 = vmatpush1.msra.mxu0 %v573
      %596 = vmatprep.subr.mxu0 0.0
      %597 = vmatpush1.msra.mxu0 %v574
      %598 = vmatprep.subr.mxu0 0.0
      %599 = vmatpush1.msra.mxu0 %v575
      %600 = vmatprep.subr.mxu0 0.0
      %601 = vmatpush1.msra.mxu0 %v576
      %602 = vmatprep.subr.mxu0 0.0
      %603 = vmatpush1.msra.mxu0 %v577
      %604 = vmatprep.subr.mxu0 0.0
      %605 = vmatpush1.msra.mxu0 %v578
      %606 = vmatprep.subr.mxu0 0.0
      %607 = vmatpush1.msra.mxu0 %v579
      %608 = vmatprep.subr.mxu0 0.0
      %609 = vmatpush1.msra.mxu0 %v580
      %610 = vmatprep.subr.mxu0 0.0
      %611 = vmatpush1.msra.mxu0 %v581
      %612 = vmatprep.subr.mxu0 0.0
      %613 = vmatpush1.msra.mxu0 %v582
      %614 = vmatprep.subr.mxu0 0.0
      %615 = vmatpush1.msra.mxu0 %v583
      %616 = vmatprep.subr.mxu0 0.0
      %617 = vmatpush1.msra.mxu0 0.0
      %618 = vmatprep.subr.mxu0 0.0
      %619 = vmatpush1.msra.mxu0 0.0
      %620 = vmatprep.subr.mxu0 0.0
      %621 = vmatpush1.msra.mxu0 0.0
      %622 = vmatprep.subr.mxu0 0.0
      %623 = vmatpush1.msra.mxu0 0.0
      %624 = vmatprep.subr.mxu0 0.0
      %625 = vmatpush1.msra.mxu0 0.0
      %626 = vmatprep.subr.mxu0 0.0
      %627 = vmatpush1.msra.mxu0 0.0
      %628 = vmatprep.subr.mxu0 0.0
      %629 = vmatpush1.msra.mxu0 0.0
      %630 = vmatprep.subr.mxu0 0.0
      %631 = vmatpush1.msra.mxu0 0.0
      %632 = vmatprep.subr.mxu0 0.0
      %633 = vmatpush1.msra.mxu0 0.0
      %634 = vmatprep.subr.mxu0 0.0
      %635 = vmatpush1.msra.mxu0 0.0
      %636 = vmatprep.subr.mxu0 0.0
      %637 = vmatpush1.msra.mxu0 0.0
      %638 = vmatprep.subr.mxu0 0.0
      %639 = vmatpush1.msra.mxu0 0.0
      %640 = vmatprep.subr.mxu0 0.0
      %641 = vmatpush1.msra.mxu0 0.0
      %642 = vmatprep.subr.mxu0 0.0
      %643 = vmatpush1.msra.mxu0 0.0
      %644 = vmatprep.subr.mxu0 0.0
      %645 = vmatpush1.msra.mxu0 0.0
      %646 = vmatprep.subr.mxu0 0.0
      %647 = vmatpush1.msra.mxu0 0.0
      %648 = vmatprep.mubr.f32.mxu0 0.0
      %649 = vmatmul.mubr.f32.gmra.mrb[0].mxu0 %v536
      %v650 = vpop.f32.mrb[0].mxu0
      %v651 = vadd.f32 0.0, %v650
      %v652 = vpop.f32.mrb[0].mxu0
      %653 = vmatprep.mubr.f32.mxu0 0.0
      %654 = vmatmul.mubr.f32.gmra.mrb[0].mxu0 %v541
      %v655 = vpop.f32.mrb[0].mxu0
      %v656 = vadd.f32 0.0, %v655
      %v657 = vpop.f32.mrb[0].mxu0
      %658 = vdwg.mxu0
      %659 = vmatprep.subr.mxu0 0.0
      %660 = vmatpush1.msra.mxu0 %v552
      %661 = vmatprep.subr.mxu0 0.0
      %662 = vmatpush1.msra.mxu0 %v553
      %663 = vmatprep.subr.mxu0 0.0
      %664 = vmatpush1.msra.mxu0 %v554
      %665 = vmatprep.subr.mxu0 0.0
      %666 = vmatpush1.msra.mxu0 %v555
      %667 = vmatprep.subr.mxu0 0.0
      %668 = vmatpush1.msra.mxu0 %v556
      %669 = vmatprep.subr.mxu0 0.0
      %670 = vmatpush1.msra.mxu0 %v557
      %671 = vmatprep.subr.mxu0 0.0
      %672 = vmatpush1.msra.mxu0 %v558
      %673 = vmatprep.subr.mxu0 0.0
      %674 = vmatpush1.msra.mxu0 %v559
      %675 = vmatprep.subr.mxu0 0.0
      %676 = vmatpush1.msra.mxu0 %v560
      %677 = vmatprep.subr.mxu0 0.0
      %678 = vmatpush1.msra.mxu0 %v561
      %679 = vmatprep.subr.mxu0 0.0
      %680 = vmatpush1.msra.mxu0 %v562
      %681 = vmatprep.subr.mxu0 0.0
      %682 = vmatpush1.msra.mxu0 %v563
      %683 = vmatprep.subr.mxu0 0.0
      %684 = vmatpush1.msra.mxu0 %v564
      %685 = vmatprep.subr.mxu0 0.0
      %686 = vmatpush1.msra.mxu0 %v565
      %687 = vmatprep.subr.mxu0 0.0
      %688 = vmatpush1.msra.mxu0 %v566
      %689 = vmatprep.subr.mxu0 0.0
      %690 = vmatpush1.msra.mxu0 %v567
      %691 = vmatprep.subr.mxu0 0.0
      %692 = vmatpush1.msra.mxu0 0.0
      %693 = vmatprep.subr.mxu0 0.0
      %694 = vmatpush1.msra.mxu0 0.0
      %695 = vmatprep.subr.mxu0 0.0
      %696 = vmatpush1.msra.mxu0 0.0
      %697 = vmatprep.subr.mxu0 0.0
      %698 = vmatpush1.msra.mxu0 0.0
      %699 = vmatprep.subr.mxu0 0.0
      %700 = vmatpush1.msra.mxu0 0.0
      %701 = vmatprep.subr.mxu0 0.0
      %702 = vmatpush1.msra.mxu0 0.0
      %703 = vmatprep.subr.mxu0 0.0
      %704 = vmatpush1.msra.mxu0 0.0
      %705 = vmatprep.subr.mxu0 0.0
      %706 = vmatpush1.msra.mxu0 0.0
      %707 = vmatprep.subr.mxu0 0.0
      %708 = vmatpush1.msra.mxu0 0.0
      %709 = vmatprep.subr.mxu0 0.0
      %710 = vmatpush1.msra.mxu0 0.0
      %711 = vmatprep.subr.mxu0 0.0
      %712 = vmatpush1.msra.mxu0 0.0
      %713 = vmatprep.subr.mxu0 0.0
      %714 = vmatpush1.msra.mxu0 0.0
      %715 = vmatprep.subr.mxu0 0.0
      %716 = vmatpush1.msra.mxu0 0.0
      %717 = vmatprep.subr.mxu0 0.0
      %718 = vmatpush1.msra.mxu0 0.0
      %719 = vmatprep.subr.mxu0 0.0
      %720 = vmatpush1.msra.mxu0 0.0
      %721 = vmatprep.subr.mxu0 0.0
      %722 = vmatpush1.msra.mxu0 0.0
      %723 = vmatprep.mubr.f32.mxu0 0.0
      %724 = vmatmul.mubr.f32.gmra.mrb[0].mxu0 %v544
      %v725 = vpop.f32.mrb[0].mxu0
      %v726 = vadd.f32 %v651, %v725
      %v727 = vpop.f32.mrb[0].mxu0
      %728 = vmatprep.mubr.f32.mxu0 0.0
      %729 = vmatmul.mubr.f32.gmra.mrb[0].mxu0 %v545
      %v730 = vpop.f32.mrb[0].mxu0
      %v731 = vadd.f32 %v656, %v730
      %v732 = vpop.f32.mrb[0].mxu0
      %733 = vdwg.mxu0
      %s734 = scalar_lea.vmem %s5, 128
      %v735 = vld [vmem:[%s734] sm:$0xff]
      %v736 = vld [vmem:[%s734 + $0x8] sm:$0xff]
      %v737 = vld [vmem:[%s734 + $0x10] sm:$0xff]
      %v738 = vld [vmem:[%s734 + $0x18] sm:$0xff]
      %v739 = vld [vmem:[%s734 + $0x20] sm:$0xff]
      %v740 = vld [vmem:[%s734 + $0x28] sm:$0xff]
      %v741 = vld [vmem:[%s734 + $0x30] sm:$0xff]
      %v742 = vld [vmem:[%s734 + $0x38] sm:$0xff]
      %v743 = vld [vmem:[%s734 + $0x40] sm:$0xff]
      %v744 = vld [vmem:[%s734 + $0x48] sm:$0xff]
      %v745 = vld [vmem:[%s734 + $0x50] sm:$0xff]
      %v746 = vld [vmem:[%s734 + $0x58] sm:$0xff]
      %v747 = vld [vmem:[%s734 + $0x60] sm:$0xff]
      %v748 = vld [vmem:[%s734 + $0x68] sm:$0xff]
      %v749 = vld [vmem:[%s734 + $0x70] sm:$0xff]
      %v750 = vld [vmem:[%s734 + $0x78] sm:$0xff]
      %s751 = scalar_lea.vmem %s6, 128
      %v752 = vld [vmem:[%s751] sm:$0xff]
      %v753 = vld [vmem:[%s751 + $0x8] sm:$0xff]
      %v754 = vld [vmem:[%s751 + $0x10] sm:$0xff]
      %v755 = vld [vmem:[%s751 + $0x18] sm:$0xff]
      %v756 = vld [vmem:[%s751 + $0x20] sm:$0xff]
      %v757 = vld [vmem:[%s751 + $0x28] sm:$0xff]
      %v758 = vld [vmem:[%s751 + $0x30] sm:$0xff]
      %v759 = vld [vmem:[%s751 + $0x38] sm:$0xff]
      %v760 = vld [vmem:[%s751 + $0x40] sm:$0xff]
      %v761 = vld [vmem:[%s751 + $0x48] sm:$0xff]
      %v762 = vld [vmem:[%s751 + $0x50] sm:$0xff]
      %v763 = vld [vmem:[%s751 + $0x58] sm:$0xff]
      %v764 = vld [vmem:[%s751 + $0x60] sm:$0xff]
      %v765 = vld [vmem:[%s751 + $0x68] sm:$0xff]
      %v766 = vld [vmem:[%s751 + $0x70] sm:$0xff]
      %v767 = vld [vmem:[%s751 + $0x78] sm:$0xff]
      %768 = vmatprep.subr.mxu0 0.0
      %769 = vmatpush1.msra.mxu0 %v752
      %770 = vmatprep.subr.mxu0 0.0
      %771 = vmatpush1.msra.mxu0 %v753
      %772 = vmatprep.subr.mxu0 0.0
      %773 = vmatpush1.msra.mxu0 %v754
      %774 = vmatprep.subr.mxu0 0.0
      %775 = vmatpush1.msra.mxu0 %v755
      %776 = vmatprep.subr.mxu0 0.0
      %777 = vmatpush1.msra.mxu0 %v756
      %778 = vmatprep.subr.mxu0 0.0
      %779 = vmatpush1.msra.mxu0 %v757
      %780 = vmatprep.subr.mxu0 0.0
      %781 = vmatpush1.msra.mxu0 %v758
      %782 = vmatprep.subr.mxu0 0.0
      %783 = vmatpush1.msra.mxu0 %v759
      %784 = vmatprep.subr.mxu0 0.0
      %785 = vmatpush1.msra.mxu0 %v760
      %786 = vmatprep.subr.mxu0 0.0
      %787 = vmatpush1.msra.mxu0 %v761
      %788 = vmatprep.subr.mxu0 0.0
      %789 = vmatpush1.msra.mxu0 %v762
      %790 = vmatprep.subr.mxu0 0.0
      %791 = vmatpush1.msra.mxu0 %v763
      %792 = vmatprep.subr.mxu0 0.0
      %793 = vmatpush1.msra.mxu0 %v764
      %794 = vmatprep.subr.mxu0 0.0
      %795 = vmatpush1.msra.mxu0 %v765
      %796 = vmatprep.subr.mxu0 0.0
      %797 = vmatpush1.msra.mxu0 %v766
      %798 = vmatprep.subr.mxu0 0.0
      %799 = vmatpush1.msra.mxu0 %v767
      %800 = vmatprep.subr.mxu0 0.0
      %801 = vmatpush1.msra.mxu0 0.0
      %802 = vmatprep.subr.mxu0 0.0
      %803 = vmatpush1.msra.mxu0 0.0
      %804 = vmatprep.subr.mxu0 0.0
      %805 = vmatpush1.msra.mxu0 0.0
      %806 = vmatprep.subr.mxu0 0.0
      %807 = vmatpush1.msra.mxu0 0.0
      %808 = vmatprep.subr.mxu0 0.0
      %809 = vmatpush1.msra.mxu0 0.0
      %810 = vmatprep.subr.mxu0 0.0
      %811 = vmatpush1.msra.mxu0 0.0
      %812 = vmatprep.subr.mxu0 0.0
      %813 = vmatpush1.msra.mxu0 0.0
      %814 = vmatprep.subr.mxu0 0.0
      %815 = vmatpush1.msra.mxu0 0.0
      %816 = vmatprep.subr.mxu0 0.0
      %817 = vmatpush1.msra.mxu0 0.0
      %818 = vmatprep.subr.mxu0 0.0
      %819 = vmatpush1.msra.mxu0 0.0
      %820 = vmatprep.subr.mxu0 0.0
      %821 = vmatpush1.msra.mxu0 0.0
      %822 = vmatprep.subr.mxu0 0.0
      %823 = vmatpush1.msra.mxu0 0.0
      %824 = vmatprep.subr.mxu0 0.0
      %825 = vmatpush1.msra.mxu0 0.0
      %826 = vmatprep.subr.mxu0 0.0
      %827 = vmatpush1.msra.mxu0 0.0
      %828 = vmatprep.subr.mxu0 0.0
      %829 = vmatpush1.msra.mxu0 0.0
      %830 = vmatprep.subr.mxu0 0.0
      %831 = vmatpush1.msra.mxu0 0.0
      %832 = vmatprep.mubr.f32.mxu0 0.0
      %833 = vmatmul.mubr.f32.gmra.mrb[0].mxu0 %v536
      %v834 = vpop.f32.mrb[0].mxu0
      %v835 = vadd.f32 0.0, %v834
      %v836 = vpop.f32.mrb[0].mxu0
      %837 = vmatprep.mubr.f32.mxu0 0.0
      %838 = vmatmul.mubr.f32.gmra.mrb[0].mxu0 %v541
      %v839 = vpop.f32.mrb[0].mxu0
      %v840 = vadd.f32 0.0, %v839
      %v841 = vpop.f32.mrb[0].mxu0
      %842 = vdwg.mxu0
      %843 = vmatprep.subr.mxu0 0.0
      %844 = vmatpush1.msra.mxu0 %v735
      %845 = vmatprep.subr.mxu0 0.0
      %846 = vmatpush1.msra.mxu0 %v736
      %847 = vmatprep.subr.mxu0 0.0
      %848 = vmatpush1.msra.mxu0 %v737
      %849 = vmatprep.subr.mxu0 0.0
      %850 = vmatpush1.msra.mxu0 %v738
      %851 = vmatprep.subr.mxu0 0.0
      %852 = vmatpush1.msra.mxu0 %v739
      %853 = vmatprep.subr.mxu0 0.0
      %854 = vmatpush1.msra.mxu0 %v740
      %855 = vmatprep.subr.mxu0 0.0
      %856 = vmatpush1.msra.mxu0 %v741
      %857 = vmatprep.subr.mxu0 0.0
      %858 = vmatpush1.msra.mxu0 %v742
      %859 = vmatprep.subr.mxu0 0.0
      %860 = vmatpush1.msra.mxu0 %v743
      %861 = vmatprep.subr.mxu0 0.0
      %862 = vmatpush1.msra.mxu0 %v744
      %863 = vmatprep.subr.mxu0 0.0
      %864 = vmatpush1.msra.mxu0 %v745
      %865 = vmatprep.subr.mxu0 0.0
      %866 = vmatpush1.msra.mxu0 %v746
      %867 = vmatprep.subr.mxu0 0.0
      %868 = vmatpush1.msra.mxu0 %v747
      %869 = vmatprep.subr.mxu0 0.0
      %870 = vmatpush1.msra.mxu0 %v748
      %871 = vmatprep.subr.mxu0 0.0
      %872 = vmatpush1.msra.mxu0 %v749
      %873 = vmatprep.subr.mxu0 0.0
      %874 = vmatpush1.msra.mxu0 %v750
      %875 = vmatprep.subr.mxu0 0.0
      %876 = vmatpush1.msra.mxu0 0.0
      %877 = vmatprep.subr.mxu0 0.0
      %878 = vmatpush1.msra.mxu0 0.0
      %879 = vmatprep.subr.mxu0 0.0
      %880 = vmatpush1.msra.mxu0 0.0
      %881 = vmatprep.subr.mxu0 0.0
      %882 = vmatpush1.msra.mxu0 0.0
      %883 = vmatprep.subr.mxu0 0.0
      %884 = vmatpush1.msra.mxu0 0.0
      %885 = vmatprep.subr.mxu0 0.0
      %886 = vmatpush1.msra.mxu0 0.0
      %887 = vmatprep.subr.mxu0 0.0
      %888 = vmatpush1.msra.mxu0 0.0
      %889 = vmatprep.subr.mxu0 0.0
      %890 = vmatpush1.msra.mxu0 0.0
      %891 = vmatprep.subr.mxu0 0.0
      %892 = vmatpush1.msra.mxu0 0.0
      %893 = vmatprep.subr.mxu0 0.0
      %894 = vmatpush1.msra.mxu0 0.0
      %895 = vmatprep.subr.mxu0 0.0
      %896 = vmatpush1.msra.mxu0 0.0
      %897 = vmatprep.subr.mxu0 0.0
      %898 = vmatpush1.msra.mxu0 0.0
      %899 = vmatprep.subr.mxu0 0.0
      %900 = vmatpush1.msra.mxu0 0.0
      %901 = vmatprep.subr.mxu0 0.0
      %902 = vmatpush1.msra.mxu0 0.0
      %903 = vmatprep.subr.mxu0 0.0
      %904 = vmatpush1.msra.mxu0 0.0
      %905 = vmatprep.subr.mxu0 0.0
      %906 = vmatpush1.msra.mxu0 0.0
      %907 = vmatprep.mubr.f32.mxu0 0.0
      %908 = vmatmul.mubr.f32.gmra.mrb[0].mxu0 %v544
      %v909 = vpop.f32.mrb[0].mxu0
      %v910 = vadd.f32 %v835, %v909
      %v911 = vpop.f32.mrb[0].mxu0
      %912 = vmatprep.mubr.f32.mxu0 0.0
      %913 = vmatmul.mubr.f32.gmra.mrb[0].mxu0 %v545
      %v914 = vpop.f32.mrb[0].mxu0
      %v915 = vadd.f32 %v840, %v914
      %v916 = vpop.f32.mrb[0].mxu0
      %917 = vdwg.mxu0
      %s918 = scalar_lea.vmem %s5, 256
      %v919 = vld [vmem:[%s918] sm:$0xff]
      %v920 = vld [vmem:[%s918 + $0x8] sm:$0xff]
      %v921 = vld [vmem:[%s918 + $0x10] sm:$0xff]
      %v922 = vld [vmem:[%s918 + $0x18] sm:$0xff]
      %v923 = vld [vmem:[%s918 + $0x20] sm:$0xff]
      %v924 = vld [vmem:[%s918 + $0x28] sm:$0xff]
      %v925 = vld [vmem:[%s918 + $0x30] sm:$0xff]
      %v926 = vld [vmem:[%s918 + $0x38] sm:$0xff]
      %v927 = vld [vmem:[%s918 + $0x40] sm:$0xff]
      %v928 = vld [vmem:[%s918 + $0x48] sm:$0xff]
      %v929 = vld [vmem:[%s918 + $0x50] sm:$0xff]
      %v930 = vld [vmem:[%s918 + $0x58] sm:$0xff]
      %v931 = vld [vmem:[%s918 + $0x60] sm:$0xff]
      %v932 = vld [vmem:[%s918 + $0x68] sm:$0xff]
      %v933 = vld [vmem:[%s918 + $0x70] sm:$0xff]
      %v934 = vld [vmem:[%s918 + $0x78] sm:$0xff]
      %s935 = scalar_lea.vmem %s6, 256
      %v936 = vld [vmem:[%s935] sm:$0xff]
      %v937 = vld [vmem:[%s935 + $0x8] sm:$0xff]
      %v938 = vld [vmem:[%s935 + $0x10] sm:$0xff]
      %v939 = vld [vmem:[%s935 + $0x18] sm:$0xff]
      %v940 = vld [vmem:[%s935 + $0x20] sm:$0xff]
      %v941 = vld [vmem:[%s935 + $0x28] sm:$0xff]
      %v942 = vld [vmem:[%s935 + $0x30] sm:$0xff]
      %v943 = vld [vmem:[%s935 + $0x38] sm:$0xff]
      %v944 = vld [vmem:[%s935 + $0x40] sm:$0xff]
      %v945 = vld [vmem:[%s935 + $0x48] sm:$0xff]
      %v946 = vld [vmem:[%s935 + $0x50] sm:$0xff]
      %v947 = vld [vmem:[%s935 + $0x58] sm:$0xff]
      %v948 = vld [vmem:[%s935 + $0x60] sm:$0xff]
      %v949 = vld [vmem:[%s935 + $0x68] sm:$0xff]
      %v950 = vld [vmem:[%s935 + $0x70] sm:$0xff]
      %v951 = vld [vmem:[%s935 + $0x78] sm:$0xff]
      %952 = vmatprep.subr.mxu0 0.0
      %953 = vmatpush1.msra.mxu0 %v936
      %954 = vmatprep.subr.mxu0 0.0
      %955 = vmatpush1.msra.mxu0 %v937
      %956 = vmatprep.subr.mxu0 0.0
      %957 = vmatpush1.msra.mxu0 %v938
      %958 = vmatprep.subr.mxu0 0.0
      %959 = vmatpush1.msra.mxu0 %v939
      %960 = vmatprep.subr.mxu0 0.0
      %961 = vmatpush1.msra.mxu0 %v940
      %962 = vmatprep.subr.mxu0 0.0
      %963 = vmatpush1.msra.mxu0 %v941
      %964 = vmatprep.subr.mxu0 0.0
      %965 = vmatpush1.msra.mxu0 %v942
      %966 = vmatprep.subr.mxu0 0.0
      %967 = vmatpush1.msra.mxu0 %v943
      %968 = vmatprep.subr.mxu0 0.0
      %969 = vmatpush1.msra.mxu0 %v944
      %970 = vmatprep.subr.mxu0 0.0
      %971 = vmatpush1.msra.mxu0 %v945
      %972 = vmatprep.subr.mxu0 0.0
      %973 = vmatpush1.msra.mxu0 %v946
      %974 = vmatprep.subr.mxu0 0.0
      %975 = vmatpush1.msra.mxu0 %v947
      %976 = vmatprep.subr.mxu0 0.0
      %977 = vmatpush1.msra.mxu0 %v948
      %978 = vmatprep.subr.mxu0 0.0
      %979 = vmatpush1.msra.mxu0 %v949
      %980 = vmatprep.subr.mxu0 0.0
      %981 = vmatpush1.msra.mxu0 %v950
      %982 = vmatprep.subr.mxu0 0.0
      %983 = vmatpush1.msra.mxu0 %v951
      %984 = vmatprep.subr.mxu0 0.0
      %985 = vmatpush1.msra.mxu0 0.0
      %986 = vmatprep.subr.mxu0 0.0
      %987 = vmatpush1.msra.mxu0 0.0
      %988 = vmatprep.subr.mxu0 0.0
      %989 = vmatpush1.msra.mxu0 0.0
      %990 = vmatprep.subr.mxu0 0.0
      %991 = vmatpush1.msra.mxu0 0.0
      %992 = vmatprep.subr.mxu0 0.0
      %993 = vmatpush1.msra.mxu0 0.0
      %994 = vmatprep.subr.mxu0 0.0
      %995 = vmatpush1.msra.mxu0 0.0
      %996 = vmatprep.subr.mxu0 0.0
      %997 = vmatpush1.msra.mxu0 0.0
      %998 = vmatprep.subr.mxu0 0.0
      %999 = vmatpush1.msra.mxu0 0.0
      %1000 = vmatprep.subr.mxu0 0.0
      %1001 = vmatpush1.msra.mxu0 0.0
      %1002 = vmatprep.subr.mxu0 0.0
      %1003 = vmatpush1.msra.mxu0 0.0
      %1004 = vmatprep.subr.mxu0 0.0
      %1005 = vmatpush1.msra.mxu0 0.0
      %1006 = vmatprep.subr.mxu0 0.0
      %1007 = vmatpush1.msra.mxu0 0.0
      %1008 = vmatprep.subr.mxu0 0.0
      %1009 = vmatpush1.msra.mxu0 0.0
      %1010 = vmatprep.subr.mxu0 0.0
      %1011 = vmatpush1.msra.mxu0 0.0
      %1012 = vmatprep.subr.mxu0 0.0
      %1013 = vmatpush1.msra.mxu0 0.0
      %1014 = vmatprep.subr.mxu0 0.0
      %1015 = vmatpush1.msra.mxu0 0.0
      %1016 = vmatprep.mubr.f32.mxu0 0.0
      %1017 = vmatmul.mubr.f32.gmra.mrb[0].mxu0 %v536
      %v1018 = vpop.f32.mrb[0].mxu0
      %v1019 = vadd.f32 0.0, %v1018
      %v1020 = vpop.f32.mrb[0].mxu0
      %1021 = vmatprep.mubr.f32.mxu0 0.0
      %1022 = vmatmul.mubr.f32.gmra.mrb[0].mxu0 %v541
      %v1023 = vpop.f32.mrb[0].mxu0
      %v1024 = vadd.f32 0.0, %v1023
      %v1025 = vpop.f32.mrb[0].mxu0
      %1026 = vdwg.mxu0
      %1027 = vmatprep.subr.mxu0 0.0
      %1028 = vmatpush1.msra.mxu0 %v919
      %1029 = vmatprep.subr.mxu0 0.0
      %1030 = vmatpush1.msra.mxu0 %v920
      %1031 = vmatprep.subr.mxu0 0.0
      %1032 = vmatpush1.msra.mxu0 %v921
      %1033 = vmatprep.subr.mxu0 0.0
      %1034 = vmatpush1.msra.mxu0 %v922
      %1035 = vmatprep.subr.mxu0 0.0
      %1036 = vmatpush1.msra.mxu0 %v923
      %1037 = vmatprep.subr.mxu0 0.0
      %1038 = vmatpush1.msra.mxu0 %v924
      %1039 = vmatprep.subr.mxu0 0.0
      %1040 = vmatpush1.msra.mxu0 %v925
      %1041 = vmatprep.subr.mxu0 0.0
      %1042 = vmatpush1.msra.mxu0 %v926
      %1043 = vmatprep.subr.mxu0 0.0
      %1044 = vmatpush1.msra.mxu0 %v927
      %1045 = vmatprep.subr.mxu0 0.0
      %1046 = vmatpush1.msra.mxu0 %v928
      %1047 = vmatprep.subr.mxu0 0.0
      %1048 = vmatpush1.msra.mxu0 %v929
      %1049 = vmatprep.subr.mxu0 0.0
      %1050 = vmatpush1.msra.mxu0 %v930
      %1051 = vmatprep.subr.mxu0 0.0
      %1052 = vmatpush1.msra.mxu0 %v931
      %1053 = vmatprep.subr.mxu0 0.0
      %1054 = vmatpush1.msra.mxu0 %v932
      %1055 = vmatprep.subr.mxu0 0.0
      %1056 = vmatpush1.msra.mxu0 %v933
      %1057 = vmatprep.subr.mxu0 0.0
      %1058 = vmatpush1.msra.mxu0 %v934
      %1059 = vmatprep.subr.mxu0 0.0
      %1060 = vmatpush1.msra.mxu0 0.0
      %1061 = vmatprep.subr.mxu0 0.0
      %1062 = vmatpush1.msra.mxu0 0.0
      %1063 = vmatprep.subr.mxu0 0.0
      %1064 = vmatpush1.msra.mxu0 0.0
      %1065 = vmatprep.subr.mxu0 0.0
      %1066 = vmatpush1.msra.mxu0 0.0
      %1067 = vmatprep.subr.mxu0 0.0
      %1068 = vmatpush1.msra.mxu0 0.0
      %1069 = vmatprep.subr.mxu0 0.0
      %1070 = vmatpush1.msra.mxu0 0.0
      %1071 = vmatprep.subr.mxu0 0.0
      %1072 = vmatpush1.msra.mxu0 0.0
      %1073 = vmatprep.subr.mxu0 0.0
      %1074 = vmatpush1.msra.mxu0 0.0
      %1075 = vmatprep.subr.mxu0 0.0
      %1076 = vmatpush1.msra.mxu0 0.0
      %1077 = vmatprep.subr.mxu0 0.0
      %1078 = vmatpush1.msra.mxu0 0.0
      %1079 = vmatprep.subr.mxu0 0.0
      %1080 = vmatpush1.msra.mxu0 0.0
      %1081 = vmatprep.subr.mxu0 0.0
      %1082 = vmatpush1.msra.mxu0 0.0
      %1083 = vmatprep.subr.mxu0 0.0
      %1084 = vmatpush1.msra.mxu0 0.0
      %1085 = vmatprep.subr.mxu0 0.0
      %1086 = vmatpush1.msra.mxu0 0.0
      %1087 = vmatprep.subr.mxu0 0.0
      %1088 = vmatpush1.msra.mxu0 0.0
      %1089 = vmatprep.subr.mxu0 0.0
      %1090 = vmatpush1.msra.mxu0 0.0
      %1091 = vmatprep.mubr.f32.mxu0 0.0
      %1092 = vmatmul.mubr.f32.gmra.mrb[0].mxu0 %v544
      %v1093 = vpop.f32.mrb[0].mxu0
      %v1094 = vadd.f32 %v1019, %v1093
      %v1095 = vpop.f32.mrb[0].mxu0
      %1096 = vmatprep.mubr.f32.mxu0 0.0
      %1097 = vmatmul.mubr.f32.gmra.mrb[0].mxu0 %v545
      %v1098 = vpop.f32.mrb[0].mxu0
      %v1099 = vadd.f32 %v1024, %v1098
      %v1100 = vpop.f32.mrb[0].mxu0
      %1101 = vdwg.mxu0
      %vm1102 = vcmask 130048
      %v1104 = vsel %vm1102, %v546, 0
      %v1107 = vsel %vm1102, %v547, 0
      %1109 = vmatprep.subr.mxu0 0.0
      %1110 = vmatpush1.msra.mxu0 %v726
      %1111 = vmatprep.subr.mxu0 0.0
      %1112 = vmatpush1.msra.mxu0 %v731
      %1113 = vmatprep.subr.mxu0 0.0
      %1114 = vmatpush1.msra.mxu0 0.0
      %1115 = vmatprep.subr.mxu0 0.0
      %1116 = vmatpush1.msra.mxu0 0.0
      %1117 = vmatprep.subr.mxu0 0.0
      %1118 = vmatpush1.msra.mxu0 0.0
      %1119 = vmatprep.subr.mxu0 0.0
      %1120 = vmatpush1.msra.mxu0 0.0
      %1121 = vmatprep.subr.mxu0 0.0
      %1122 = vmatpush1.msra.mxu0 0.0
      %1123 = vmatprep.subr.mxu0 0.0
      %1124 = vmatpush1.msra.mxu0 0.0
      %1125 = vmatprep.subr.mxu0 0.0
      %1126 = vmatpush1.msra.mxu0 0.0
      %1127 = vmatprep.subr.mxu0 0.0
      %1128 = vmatpush1.msra.mxu0 0.0
      %1129 = vmatprep.subr.mxu0 0.0
      %1130 = vmatpush1.msra.mxu0 0.0
      %1131 = vmatprep.subr.mxu0 0.0
      %1132 = vmatpush1.msra.mxu0 0.0
      %1133 = vmatprep.subr.mxu0 0.0
      %1134 = vmatpush1.msra.mxu0 0.0
      %1135 = vmatprep.subr.mxu0 0.0
      %1136 = vmatpush1.msra.mxu0 0.0
      %1137 = vmatprep.subr.mxu0 0.0
      %1138 = vmatpush1.msra.mxu0 0.0
      %1139 = vmatprep.subr.mxu0 0.0
      %1140 = vmatpush1.msra.mxu0 0.0
      %1141 = vmatprep.subr.mxu0 0.0
      %1142 = vmatpush1.msra.mxu0 0.0
      %1143 = vmatprep.subr.mxu0 0.0
      %1144 = vmatpush1.msra.mxu0 0.0
      %1145 = vmatprep.subr.mxu0 0.0
      %1146 = vmatpush1.msra.mxu0 0.0
      %1147 = vmatprep.subr.mxu0 0.0
      %1148 = vmatpush1.msra.mxu0 0.0
      %1149 = vmatprep.subr.mxu0 0.0
      %1150 = vmatpush1.msra.mxu0 0.0
      %1151 = vmatprep.subr.mxu0 0.0
      %1152 = vmatpush1.msra.mxu0 0.0
      %1153 = vmatprep.subr.mxu0 0.0
      %1154 = vmatpush1.msra.mxu0 0.0
      %1155 = vmatprep.subr.mxu0 0.0
      %1156 = vmatpush1.msra.mxu0 0.0
      %1157 = vmatprep.subr.mxu0 0.0
      %1158 = vmatpush1.msra.mxu0 0.0
      %1159 = vmatprep.subr.mxu0 0.0
      %1160 = vmatpush1.msra.mxu0 0.0
      %1161 = vmatprep.subr.mxu0 0.0
      %1162 = vmatpush1.msra.mxu0 0.0
      %1163 = vmatprep.subr.mxu0 0.0
      %1164 = vmatpush1.msra.mxu0 0.0
      %1165 = vmatprep.subr.mxu0 0.0
      %1166 = vmatpush1.msra.mxu0 0.0
      %1167 = vmatprep.subr.mxu0 0.0
      %1168 = vmatpush1.msra.mxu0 0.0
      %1169 = vmatprep.subr.mxu0 0.0
      %1170 = vmatpush1.msra.mxu0 0.0
      %1171 = vmatprep.subr.mxu0 0.0
      %1172 = vmatpush1.msra.mxu0 0.0
      %1173 = vmatprep.mubr.f32.mxu0 0.0
      %1174 = vmatmul.mubr.f32.gmra.mrb[0].mxu0 %v1104
      %v1175 = vpop.f32.mrb[0].mxu0
      %v1176 = vadd.f32 0.0, %v1175
      %v1177 = vpop.f32.mrb[0].mxu0
      %1178 = vmatprep.mubr.f32.mxu0 0.0
      %1179 = vmatmul.mubr.f32.gmra.mrb[0].mxu0 %v1107
      %v1180 = vpop.f32.mrb[0].mxu0
      %v1181 = vadd.f32 0.0, %v1180
      %v1182 = vpop.f32.mrb[0].mxu0
      %1183 = vdwg.mxu0
      %v1184 = vadd.f32 %v910, %v1176
      %v1185 = vadd.f32 %v915, %v1181
      %v1187 = vsel %vm1102, %v549, 0
      %v1190 = vsel %vm1102, %v550, 0
      %1192 = vmatprep.subr.mxu0 0.0
      %1193 = vmatpush1.msra.mxu0 %v1094
      %1194 = vmatprep.subr.mxu0 0.0
      %1195 = vmatpush1.msra.mxu0 %v1099
      %1196 = vmatprep.subr.mxu0 0.0
      %1197 = vmatpush1.msra.mxu0 0.0
      %1198 = vmatprep.subr.mxu0 0.0
      %1199 = vmatpush1.msra.mxu0 0.0
      %1200 = vmatprep.subr.mxu0 0.0
      %1201 = vmatpush1.msra.mxu0 0.0
      %1202 = vmatprep.subr.mxu0 0.0
      %1203 = vmatpush1.msra.mxu0 0.0
      %1204 = vmatprep.subr.mxu0 0.0
      %1205 = vmatpush1.msra.mxu0 0.0
      %1206 = vmatprep.subr.mxu0 0.0
      %1207 = vmatpush1.msra.mxu0 0.0
      %1208 = vmatprep.subr.mxu0 0.0
      %1209 = vmatpush1.msra.mxu0 0.0
      %1210 = vmatprep.subr.mxu0 0.0
      %1211 = vmatpush1.msra.mxu0 0.0
      %1212 = vmatprep.subr.mxu0 0.0
      %1213 = vmatpush1.msra.mxu0 0.0
      %1214 = vmatprep.subr.mxu0 0.0
      %1215 = vmatpush1.msra.mxu0 0.0
      %1216 = vmatprep.subr.mxu0 0.0
      %1217 = vmatpush1.msra.mxu0 0.0
      %1218 = vmatprep.subr.mxu0 0.0
      %1219 = vmatpush1.msra.mxu0 0.0
      %1220 = vmatprep.subr.mxu0 0.0
      %1221 = vmatpush1.msra.mxu0 0.0
      %1222 = vmatprep.subr.mxu0 0.0
      %1223 = vmatpush1.msra.mxu0 0.0
      %1224 = vmatprep.subr.mxu0 0.0
      %1225 = vmatpush1.msra.mxu0 0.0
      %1226 = vmatprep.subr.mxu0 0.0
      %1227 = vmatpush1.msra.mxu0 0.0
      %1228 = vmatprep.subr.mxu0 0.0
      %1229 = vmatpush1.msra.mxu0 0.0
      %1230 = vmatprep.subr.mxu0 0.0
      %1231 = vmatpush1.msra.mxu0 0.0
      %1232 = vmatprep.subr.mxu0 0.0
      %1233 = vmatpush1.msra.mxu0 0.0
      %1234 = vmatprep.subr.mxu0 0.0
      %1235 = vmatpush1.msra.mxu0 0.0
      %1236 = vmatprep.subr.mxu0 0.0
      %1237 = vmatpush1.msra.mxu0 0.0
      %1238 = vmatprep.subr.mxu0 0.0
      %1239 = vmatpush1.msra.mxu0 0.0
      %1240 = vmatprep.subr.mxu0 0.0
      %1241 = vmatpush1.msra.mxu0 0.0
      %1242 = vmatprep.subr.mxu0 0.0
      %1243 = vmatpush1.msra.mxu0 0.0
      %1244 = vmatprep.subr.mxu0 0.0
      %1245 = vmatpush1.msra.mxu0 0.0
      %1246 = vmatprep.subr.mxu0 0.0
      %1247 = vmatpush1.msra.mxu0 0.0
      %1248 = vmatprep.subr.mxu0 0.0
      %1249 = vmatpush1.msra.mxu0 0.0
      %1250 = vmatprep.subr.mxu0 0.0
      %1251 = vmatpush1.msra.mxu0 0.0
      %1252 = vmatprep.subr.mxu0 0.0
      %1253 = vmatpush1.msra.mxu0 0.0
      %1254 = vmatprep.subr.mxu0 0.0
      %1255 = vmatpush1.msra.mxu0 0.0
      %1256 = vmatprep.mubr.f32.mxu0 0.0
      %1257 = vmatmul.mubr.f32.gmra.mrb[0].mxu0 %v1187
      %v1258 = vpop.f32.mrb[0].mxu0
      %v1259 = vadd.f32 0.0, %v1258
      %v1260 = vpop.f32.mrb[0].mxu0
      %1261 = vmatprep.mubr.f32.mxu0 0.0
      %1262 = vmatmul.mubr.f32.gmra.mrb[0].mxu0 %v1190
      %v1263 = vpop.f32.mrb[0].mxu0
      %v1264 = vadd.f32 0.0, %v1263
      %v1265 = vpop.f32.mrb[0].mxu0
      %1266 = vdwg.mxu0
      %v1267 = vadd.f32 %v1184, %v1259
      %v1268 = vadd.f32 %v1185, %v1264
      %v1270 = vlaneseq
      %v1271 = vshrl.u32 %v1270, 7
      %v1272 = vsub.s32 0, %v1271
      %v1273 = vrot.slane %v551, %v1272
      %v1275 = vadd.f32 %v1267, %v1273
      %v1276 = vadd.f32 %v1268, %v1273
      %v1277 = vmax.f32 %v1275, 0.0
      %v1278 = vmax.f32 %v1276, 0.0
      %v1279 = vld [vmem:[%s9] sm:$0x1]
      %v1280 = vld [vmem:[%s8] sm:$0xff]
      %v1281 = vld [vmem:[%s8 + $0x8] sm:$0xff]
      %v1282 = vld [vmem:[%s8 + $0x10] sm:$0xff]
      %v1283 = vld [vmem:[%s8 + $0x18] sm:$0xff]
      %v1284 = vld [vmem:[%s8 + $0x20] sm:$0xff]
      %v1285 = vld [vmem:[%s8 + $0x28] sm:$0xff]
      %v1286 = vld [vmem:[%s8 + $0x30] sm:$0xff]
      %v1287 = vld [vmem:[%s8 + $0x38] sm:$0xff]
      %v1288 = vld [vmem:[%s8 + $0x40] sm:$0xff]
      %v1289 = vld [vmem:[%s8 + $0x48] sm:$0xff]
      %v1290 = vld [vmem:[%s8 + $0x50] sm:$0xff]
      %v1291 = vld [vmem:[%s8 + $0x58] sm:$0xff]
      %v1292 = vld [vmem:[%s8 + $0x60] sm:$0xff]
      %v1293 = vld [vmem:[%s8 + $0x68] sm:$0xff]
      %v1294 = vld [vmem:[%s8 + $0x70] sm:$0xff]
      %v1295 = vld [vmem:[%s8 + $0x78] sm:$0xff]
      %1296 = vmatprep.subr.mxu0 0.0
      %1297 = vmatpush1.msra.mxu0 %v1280
      %1298 = vmatprep.subr.mxu0 0.0
      %1299 = vmatpush1.msra.mxu0 %v1281
      %1300 = vmatprep.subr.mxu0 0.0
      %1301 = vmatpush1.msra.mxu0 %v1282
      %1302 = vmatprep.subr.mxu0 0.0
      %1303 = vmatpush1.msra.mxu0 %v1283
      %1304 = vmatprep.subr.mxu0 0.0
      %1305 = vmatpush1.msra.mxu0 %v1284
      %1306 = vmatprep.subr.mxu0 0.0
      %1307 = vmatpush1.msra.mxu0 %v1285
      %1308 = vmatprep.subr.mxu0 0.0
      %1309 = vmatpush1.msra.mxu0 %v1286
      %1310 = vmatprep.subr.mxu0 0.0
      %1311 = vmatpush1.msra.mxu0 %v1287
      %1312 = vmatprep.subr.mxu0 0.0
      %1313 = vmatpush1.msra.mxu0 %v1288
      %1314 = vmatprep.subr.mxu0 0.0
      %1315 = vmatpush1.msra.mxu0 %v1289
      %1316 = vmatprep.subr.mxu0 0.0
      %1317 = vmatpush1.msra.mxu0 %v1290
      %1318 = vmatprep.subr.mxu0 0.0
      %1319 = vmatpush1.msra.mxu0 %v1291
      %1320 = vmatprep.subr.mxu0 0.0
      %1321 = vmatpush1.msra.mxu0 %v1292
      %1322 = vmatprep.subr.mxu0 0.0
      %1323 = vmatpush1.msra.mxu0 %v1293
      %1324 = vmatprep.subr.mxu0 0.0
      %1325 = vmatpush1.msra.mxu0 %v1294
      %1326 = vmatprep.subr.mxu0 0.0
      %1327 = vmatpush1.msra.mxu0 %v1295
      %1328 = vmatprep.subr.mxu0 0.0
      %1329 = vmatpush1.msra.mxu0 0.0
      %1330 = vmatprep.subr.mxu0 0.0
      %1331 = vmatpush1.msra.mxu0 0.0
      %1332 = vmatprep.subr.mxu0 0.0
      %1333 = vmatpush1.msra.mxu0 0.0
      %1334 = vmatprep.subr.mxu0 0.0
      %1335 = vmatpush1.msra.mxu0 0.0
      %1336 = vmatprep.subr.mxu0 0.0
      %1337 = vmatpush1.msra.mxu0 0.0
      %1338 = vmatprep.subr.mxu0 0.0
      %1339 = vmatpush1.msra.mxu0 0.0
      %1340 = vmatprep.subr.mxu0 0.0
      %1341 = vmatpush1.msra.mxu0 0.0
      %1342 = vmatprep.subr.mxu0 0.0
      %1343 = vmatpush1.msra.mxu0 0.0
      %1344 = vmatprep.subr.mxu0 0.0
      %1345 = vmatpush1.msra.mxu0 0.0
      %1346 = vmatprep.subr.mxu0 0.0
      %1347 = vmatpush1.msra.mxu0 0.0
      %1348 = vmatprep.subr.mxu0 0.0
      %1349 = vmatpush1.msra.mxu0 0.0
      %1350 = vmatprep.subr.mxu0 0.0
      %1351 = vmatpush1.msra.mxu0 0.0
      %1352 = vmatprep.subr.mxu0 0.0
      %1353 = vmatpush1.msra.mxu0 0.0
      %1354 = vmatprep.subr.mxu0 0.0
      %1355 = vmatpush1.msra.mxu0 0.0
      %1356 = vmatprep.subr.mxu0 0.0
      %1357 = vmatpush1.msra.mxu0 0.0
      %1358 = vmatprep.subr.mxu0 0.0
      %1359 = vmatpush1.msra.mxu0 0.0
      %1360 = vmatprep.mubr.f32.mxu0 0.0
      %1361 = vmatmul.mubr.f32.gmra.mrb[0].mxu0 %v1277
      %v1362 = vpop.f32.mrb[0].mxu0
      %v1363 = vadd.f32 0.0, %v1362
      %v1364 = vpop.f32.mrb[0].mxu0
      %1365 = vmatprep.mubr.f32.mxu0 0.0
      %1366 = vmatmul.mubr.f32.gmra.mrb[0].mxu0 %v1278
      %v1367 = vpop.f32.mrb[0].mxu0
      %v1368 = vadd.f32 0.0, %v1367
      %v1369 = vpop.f32.mrb[0].mxu0
      %1370 = vdwg.mxu0
      %s1371 = scalar_lea.vmem %s8, 128
      %v1372 = vld [vmem:[%s1371] sm:$0xff]
      %v1373 = vld [vmem:[%s1371 + $0x8] sm:$0xff]
      %v1374 = vld [vmem:[%s1371 + $0x10] sm:$0xff]
      %v1375 = vld [vmem:[%s1371 + $0x18] sm:$0xff]
      %v1376 = vld [vmem:[%s1371 + $0x20] sm:$0xff]
      %v1377 = vld [vmem:[%s1371 + $0x28] sm:$0xff]
      %v1378 = vld [vmem:[%s1371 + $0x30] sm:$0xff]
      %v1379 = vld [vmem:[%s1371 + $0x38] sm:$0xff]
      %v1380 = vld [vmem:[%s1371 + $0x40] sm:$0xff]
      %v1381 = vld [vmem:[%s1371 + $0x48] sm:$0xff]
      %v1382 = vld [vmem:[%s1371 + $0x50] sm:$0xff]
      %v1383 = vld [vmem:[%s1371 + $0x58] sm:$0xff]
      %v1384 = vld [vmem:[%s1371 + $0x60] sm:$0xff]
      %v1385 = vld [vmem:[%s1371 + $0x68] sm:$0xff]
      %v1386 = vld [vmem:[%s1371 + $0x70] sm:$0xff]
      %v1387 = vld [vmem:[%s1371 + $0x78] sm:$0xff]
      %s1388 = scalar_lea.vmem %s8, 256
      %v1389 = vld [vmem:[%s1388] sm:$0xff]
      %v1390 = vld [vmem:[%s1388 + $0x8] sm:$0xff]
      %v1391 = vld [vmem:[%s1388 + $0x10] sm:$0xff]
      %v1392 = vld [vmem:[%s1388 + $0x18] sm:$0xff]
      %v1393 = vld [vmem:[%s1388 + $0x20] sm:$0xff]
      %v1394 = vld [vmem:[%s1388 + $0x28] sm:$0xff]
      %v1395 = vld [vmem:[%s1388 + $0x30] sm:$0xff]
      %v1396 = vld [vmem:[%s1388 + $0x38] sm:$0xff]
      %v1397 = vld [vmem:[%s1388 + $0x40] sm:$0xff]
      %v1398 = vld [vmem:[%s1388 + $0x48] sm:$0xff]
      %v1399 = vld [vmem:[%s1388 + $0x50] sm:$0xff]
      %v1400 = vld [vmem:[%s1388 + $0x58] sm:$0xff]
      %v1401 = vld [vmem:[%s1388 + $0x60] sm:$0xff]
      %v1402 = vld [vmem:[%s1388 + $0x68] sm:$0xff]
      %v1403 = vld [vmem:[%s1388 + $0x70] sm:$0xff]
      %v1404 = vld [vmem:[%s1388 + $0x78] sm:$0xff]
      %1405 = vmatprep.subr.mxu0 0.0
      %1406 = vmatpush1.msra.mxu0 %v1389
      %1407 = vmatprep.subr.mxu0 0.0
      %1408 = vmatpush1.msra.mxu0 %v1390
      %1409 = vmatprep.subr.mxu0 0.0
      %1410 = vmatpush1.msra.mxu0 %v1391
      %1411 = vmatprep.subr.mxu0 0.0
      %1412 = vmatpush1.msra.mxu0 %v1392
      %1413 = vmatprep.subr.mxu0 0.0
      %1414 = vmatpush1.msra.mxu0 %v1393
      %1415 = vmatprep.subr.mxu0 0.0
      %1416 = vmatpush1.msra.mxu0 %v1394
      %1417 = vmatprep.subr.mxu0 0.0
      %1418 = vmatpush1.msra.mxu0 %v1395
      %1419 = vmatprep.subr.mxu0 0.0
      %1420 = vmatpush1.msra.mxu0 %v1396
      %1421 = vmatprep.subr.mxu0 0.0
      %1422 = vmatpush1.msra.mxu0 %v1397
      %1423 = vmatprep.subr.mxu0 0.0
      %1424 = vmatpush1.msra.mxu0 %v1398
      %1425 = vmatprep.subr.mxu0 0.0
      %1426 = vmatpush1.msra.mxu0 %v1399
      %1427 = vmatprep.subr.mxu0 0.0
      %1428 = vmatpush1.msra.mxu0 %v1400
      %1429 = vmatprep.subr.mxu0 0.0
      %1430 = vmatpush1.msra.mxu0 %v1401
      %1431 = vmatprep.subr.mxu0 0.0
      %1432 = vmatpush1.msra.mxu0 %v1402
      %1433 = vmatprep.subr.mxu0 0.0
      %1434 = vmatpush1.msra.mxu0 %v1403
      %1435 = vmatprep.subr.mxu0 0.0
      %1436 = vmatpush1.msra.mxu0 %v1404
      %1437 = vmatprep.subr.mxu0 0.0
      %1438 = vmatpush1.msra.mxu0 0.0
      %1439 = vmatprep.subr.mxu0 0.0
      %1440 = vmatpush1.msra.mxu0 0.0
      %1441 = vmatprep.subr.mxu0 0.0
      %1442 = vmatpush1.msra.mxu0 0.0
      %1443 = vmatprep.subr.mxu0 0.0
      %1444 = vmatpush1.msra.mxu0 0.0
      %1445 = vmatprep.subr.mxu0 0.0
      %1446 = vmatpush1.msra.mxu0 0.0
      %1447 = vmatprep.subr.mxu0 0.0
      %1448 = vmatpush1.msra.mxu0 0.0
      %1449 = vmatprep.subr.mxu0 0.0
      %1450 = vmatpush1.msra.mxu0 0.0
      %1451 = vmatprep.subr.mxu0 0.0
      %1452 = vmatpush1.msra.mxu0 0.0
      %1453 = vmatprep.subr.mxu0 0.0
      %1454 = vmatpush1.msra.mxu0 0.0
      %1455 = vmatprep.subr.mxu0 0.0
      %1456 = vmatpush1.msra.mxu0 0.0
      %1457 = vmatprep.subr.mxu0 0.0
      %1458 = vmatpush1.msra.mxu0 0.0
      %1459 = vmatprep.subr.mxu0 0.0
      %1460 = vmatpush1.msra.mxu0 0.0
      %1461 = vmatprep.subr.mxu0 0.0
      %1462 = vmatpush1.msra.mxu0 0.0
      %1463 = vmatprep.subr.mxu0 0.0
      %1464 = vmatpush1.msra.mxu0 0.0
      %1465 = vmatprep.subr.mxu0 0.0
      %1466 = vmatpush1.msra.mxu0 0.0
      %1467 = vmatprep.subr.mxu0 0.0
      %1468 = vmatpush1.msra.mxu0 0.0
      %1469 = vmatprep.mubr.f32.mxu0 0.0
      %1470 = vmatmul.mubr.f32.gmra.mrb[0].mxu0 %v1277
      %v1471 = vpop.f32.mrb[0].mxu0
      %v1472 = vadd.f32 0.0, %v1471
      %v1473 = vpop.f32.mrb[0].mxu0
      %1474 = vmatprep.mubr.f32.mxu0 0.0
      %1475 = vmatmul.mubr.f32.gmra.mrb[0].mxu0 %v1278
      %v1476 = vpop.f32.mrb[0].mxu0
      %v1477 = vadd.f32 0.0, %v1476
      %v1478 = vpop.f32.mrb[0].mxu0
      %1479 = vdwg.mxu0
      %1480 = vmatprep.subr.mxu0 0.0
      %1481 = vmatpush1.msra.mxu0 %v1363
      %1482 = vmatprep.subr.mxu0 0.0
      %1483 = vmatpush1.msra.mxu0 %v1368
      %1484 = vmatprep.subr.mxu0 0.0
      %1485 = vmatpush1.msra.mxu0 0.0
      %1486 = vmatprep.subr.mxu0 0.0
      %1487 = vmatpush1.msra.mxu0 0.0
      %1488 = vmatprep.subr.mxu0 0.0
      %1489 = vmatpush1.msra.mxu0 0.0
      %1490 = vmatprep.subr.mxu0 0.0
      %1491 = vmatpush1.msra.mxu0 0.0
      %1492 = vmatprep.subr.mxu0 0.0
      %1493 = vmatpush1.msra.mxu0 0.0
      %1494 = vmatprep.subr.mxu0 0.0
      %1495 = vmatpush1.msra.mxu0 0.0
      %1496 = vmatprep.subr.mxu0 0.0
      %1497 = vmatpush1.msra.mxu0 0.0
      %1498 = vmatprep.subr.mxu0 0.0
      %1499 = vmatpush1.msra.mxu0 0.0
      %1500 = vmatprep.subr.mxu0 0.0
      %1501 = vmatpush1.msra.mxu0 0.0
      %1502 = vmatprep.subr.mxu0 0.0
      %1503 = vmatpush1.msra.mxu0 0.0
      %1504 = vmatprep.subr.mxu0 0.0
      %1505 = vmatpush1.msra.mxu0 0.0
      %1506 = vmatprep.subr.mxu0 0.0
      %1507 = vmatpush1.msra.mxu0 0.0
      %1508 = vmatprep.subr.mxu0 0.0
      %1509 = vmatpush1.msra.mxu0 0.0
      %1510 = vmatprep.subr.mxu0 0.0
      %1511 = vmatpush1.msra.mxu0 0.0
      %1512 = vmatprep.subr.mxu0 0.0
      %1513 = vmatpush1.msra.mxu0 0.0
      %1514 = vmatprep.subr.mxu0 0.0
      %1515 = vmatpush1.msra.mxu0 0.0
      %1516 = vmatprep.subr.mxu0 0.0
      %1517 = vmatpush1.msra.mxu0 0.0
      %1518 = vmatprep.subr.mxu0 0.0
      %1519 = vmatpush1.msra.mxu0 0.0
      %1520 = vmatprep.subr.mxu0 0.0
      %1521 = vmatpush1.msra.mxu0 0.0
      %1522 = vmatprep.subr.mxu0 0.0
      %1523 = vmatpush1.msra.mxu0 0.0
      %1524 = vmatprep.subr.mxu0 0.0
      %1525 = vmatpush1.msra.mxu0 0.0
      %1526 = vmatprep.subr.mxu0 0.0
      %1527 = vmatpush1.msra.mxu0 0.0
      %1528 = vmatprep.subr.mxu0 0.0
      %1529 = vmatpush1.msra.mxu0 0.0
      %1530 = vmatprep.subr.mxu0 0.0
      %1531 = vmatpush1.msra.mxu0 0.0
      %1532 = vmatprep.subr.mxu0 0.0
      %1533 = vmatpush1.msra.mxu0 0.0
      %1534 = vmatprep.subr.mxu0 0.0
      %1535 = vmatpush1.msra.mxu0 0.0
      %1536 = vmatprep.subr.mxu0 0.0
      %1537 = vmatpush1.msra.mxu0 0.0
      %1538 = vmatprep.subr.mxu0 0.0
      %1539 = vmatpush1.msra.mxu0 0.0
      %1540 = vmatprep.subr.mxu0 0.0
      %1541 = vmatpush1.msra.mxu0 0.0
      %1542 = vmatprep.subr.mxu0 0.0
      %1543 = vmatpush1.msra.mxu0 0.0
      %1544 = vmatprep.mubr.f32.mxu0 0.0
      %1545 = vmatmul.mubr.f32.gmra.mrb[0].mxu0 %v1104
      %v1546 = vpop.f32.mrb[0].mxu0
      %v1547 = vadd.f32 0.0, %v1546
      %v1548 = vpop.f32.mrb[0].mxu0
      %1549 = vmatprep.mubr.f32.mxu0 0.0
      %1550 = vmatmul.mubr.f32.gmra.mrb[0].mxu0 %v1107
      %v1551 = vpop.f32.mrb[0].mxu0
      %v1552 = vadd.f32 0.0, %v1551
      %v1553 = vpop.f32.mrb[0].mxu0
      %1554 = vdwg.mxu0
      %1555 = vmatprep.subr.mxu0 0.0
      %1556 = vmatpush1.msra.mxu0 %v1372
      %1557 = vmatprep.subr.mxu0 0.0
      %1558 = vmatpush1.msra.mxu0 %v1373
      %1559 = vmatprep.subr.mxu0 0.0
      %1560 = vmatpush1.msra.mxu0 %v1374
      %1561 = vmatprep.subr.mxu0 0.0
      %1562 = vmatpush1.msra.mxu0 %v1375
      %1563 = vmatprep.subr.mxu0 0.0
      %1564 = vmatpush1.msra.mxu0 %v1376
      %1565 = vmatprep.subr.mxu0 0.0
      %1566 = vmatpush1.msra.mxu0 %v1377
      %1567 = vmatprep.subr.mxu0 0.0
      %1568 = vmatpush1.msra.mxu0 %v1378
      %1569 = vmatprep.subr.mxu0 0.0
      %1570 = vmatpush1.msra.mxu0 %v1379
      %1571 = vmatprep.subr.mxu0 0.0
      %1572 = vmatpush1.msra.mxu0 %v1380
      %1573 = vmatprep.subr.mxu0 0.0
      %1574 = vmatpush1.msra.mxu0 %v1381
      %1575 = vmatprep.subr.mxu0 0.0
      %1576 = vmatpush1.msra.mxu0 %v1382
      %1577 = vmatprep.subr.mxu0 0.0
      %1578 = vmatpush1.msra.mxu0 %v1383
      %1579 = vmatprep.subr.mxu0 0.0
      %1580 = vmatpush1.msra.mxu0 %v1384
      %1581 = vmatprep.subr.mxu0 0.0
      %1582 = vmatpush1.msra.mxu0 %v1385
      %1583 = vmatprep.subr.mxu0 0.0
      %1584 = vmatpush1.msra.mxu0 %v1386
      %1585 = vmatprep.subr.mxu0 0.0
      %1586 = vmatpush1.msra.mxu0 %v1387
      %1587 = vmatprep.subr.mxu0 0.0
      %1588 = vmatpush1.msra.mxu0 0.0
      %1589 = vmatprep.subr.mxu0 0.0
      %1590 = vmatpush1.msra.mxu0 0.0
      %1591 = vmatprep.subr.mxu0 0.0
      %1592 = vmatpush1.msra.mxu0 0.0
      %1593 = vmatprep.subr.mxu0 0.0
      %1594 = vmatpush1.msra.mxu0 0.0
      %1595 = vmatprep.subr.mxu0 0.0
      %1596 = vmatpush1.msra.mxu0 0.0
      %1597 = vmatprep.subr.mxu0 0.0
      %1598 = vmatpush1.msra.mxu0 0.0
      %1599 = vmatprep.subr.mxu0 0.0
      %1600 = vmatpush1.msra.mxu0 0.0
      %1601 = vmatprep.subr.mxu0 0.0
      %1602 = vmatpush1.msra.mxu0 0.0
      %1603 = vmatprep.subr.mxu0 0.0
      %1604 = vmatpush1.msra.mxu0 0.0
      %1605 = vmatprep.subr.mxu0 0.0
      %1606 = vmatpush1.msra.mxu0 0.0
      %1607 = vmatprep.subr.mxu0 0.0
      %1608 = vmatpush1.msra.mxu0 0.0
      %1609 = vmatprep.subr.mxu0 0.0
      %1610 = vmatpush1.msra.mxu0 0.0
      %1611 = vmatprep.subr.mxu0 0.0
      %1612 = vmatpush1.msra.mxu0 0.0
      %1613 = vmatprep.subr.mxu0 0.0
      %1614 = vmatpush1.msra.mxu0 0.0
      %1615 = vmatprep.subr.mxu0 0.0
      %1616 = vmatpush1.msra.mxu0 0.0
      %1617 = vmatprep.subr.mxu0 0.0
      %1618 = vmatpush1.msra.mxu0 0.0
      %1619 = vmatprep.mubr.f32.mxu0 0.0
      %1620 = vmatmul.mubr.f32.gmra.mrb[0].mxu0 %v1277
      %v1621 = vpop.f32.mrb[0].mxu0
      %v1622 = vadd.f32 %v1547, %v1621
      %v1623 = vpop.f32.mrb[0].mxu0
      %1624 = vmatprep.mubr.f32.mxu0 0.0
      %1625 = vmatmul.mubr.f32.gmra.mrb[0].mxu0 %v1278
      %v1626 = vpop.f32.mrb[0].mxu0
      %v1627 = vadd.f32 %v1552, %v1626
      %v1628 = vpop.f32.mrb[0].mxu0
      %1629 = vdwg.mxu0
      %1630 = vmatprep.subr.mxu0 0.0
      %1631 = vmatpush1.msra.mxu0 %v1472
      %1632 = vmatprep.subr.mxu0 0.0
      %1633 = vmatpush1.msra.mxu0 %v1477
      %1634 = vmatprep.subr.mxu0 0.0
      %1635 = vmatpush1.msra.mxu0 0.0
      %1636 = vmatprep.subr.mxu0 0.0
      %1637 = vmatpush1.msra.mxu0 0.0
      %1638 = vmatprep.subr.mxu0 0.0
      %1639 = vmatpush1.msra.mxu0 0.0
      %1640 = vmatprep.subr.mxu0 0.0
      %1641 = vmatpush1.msra.mxu0 0.0
      %1642 = vmatprep.subr.mxu0 0.0
      %1643 = vmatpush1.msra.mxu0 0.0
      %1644 = vmatprep.subr.mxu0 0.0
      %1645 = vmatpush1.msra.mxu0 0.0
      %1646 = vmatprep.subr.mxu0 0.0
      %1647 = vmatpush1.msra.mxu0 0.0
      %1648 = vmatprep.subr.mxu0 0.0
      %1649 = vmatpush1.msra.mxu0 0.0
      %1650 = vmatprep.subr.mxu0 0.0
      %1651 = vmatpush1.msra.mxu0 0.0
      %1652 = vmatprep.subr.mxu0 0.0
      %1653 = vmatpush1.msra.mxu0 0.0
      %1654 = vmatprep.subr.mxu0 0.0
      %1655 = vmatpush1.msra.mxu0 0.0
      %1656 = vmatprep.subr.mxu0 0.0
      %1657 = vmatpush1.msra.mxu0 0.0
      %1658 = vmatprep.subr.mxu0 0.0
      %1659 = vmatpush1.msra.mxu0 0.0
      %1660 = vmatprep.subr.mxu0 0.0
      %1661 = vmatpush1.msra.mxu0 0.0
      %1662 = vmatprep.subr.mxu0 0.0
      %1663 = vmatpush1.msra.mxu0 0.0
      %1664 = vmatprep.subr.mxu0 0.0
      %1665 = vmatpush1.msra.mxu0 0.0
      %1666 = vmatprep.subr.mxu0 0.0
      %1667 = vmatpush1.msra.mxu0 0.0
      %1668 = vmatprep.subr.mxu0 0.0
      %1669 = vmatpush1.msra.mxu0 0.0
      %1670 = vmatprep.subr.mxu0 0.0
      %1671 = vmatpush1.msra.mxu0 0.0
      %1672 = vmatprep.subr.mxu0 0.0
      %1673 = vmatpush1.msra.mxu0 0.0
      %1674 = vmatprep.subr.mxu0 0.0
      %1675 = vmatpush1.msra.mxu0 0.0
      %1676 = vmatprep.subr.mxu0 0.0
      %1677 = vmatpush1.msra.mxu0 0.0
      %1678 = vmatprep.subr.mxu0 0.0
      %1679 = vmatpush1.msra.mxu0 0.0
      %1680 = vmatprep.subr.mxu0 0.0
      %1681 = vmatpush1.msra.mxu0 0.0
      %1682 = vmatprep.subr.mxu0 0.0
      %1683 = vmatpush1.msra.mxu0 0.0
      %1684 = vmatprep.subr.mxu0 0.0
      %1685 = vmatpush1.msra.mxu0 0.0
      %1686 = vmatprep.subr.mxu0 0.0
      %1687 = vmatpush1.msra.mxu0 0.0
      %1688 = vmatprep.subr.mxu0 0.0
      %1689 = vmatpush1.msra.mxu0 0.0
      %1690 = vmatprep.subr.mxu0 0.0
      %1691 = vmatpush1.msra.mxu0 0.0
      %1692 = vmatprep.subr.mxu0 0.0
      %1693 = vmatpush1.msra.mxu0 0.0
      %1694 = vmatprep.mubr.f32.mxu0 0.0
      %1695 = vmatmul.mubr.f32.gmra.mrb[0].mxu0 %v1187
      %v1696 = vpop.f32.mrb[0].mxu0
      %v1697 = vadd.f32 0.0, %v1696
      %v1698 = vpop.f32.mrb[0].mxu0
      %1699 = vmatprep.mubr.f32.mxu0 0.0
      %1700 = vmatmul.mubr.f32.gmra.mrb[0].mxu0 %v1190
      %v1701 = vpop.f32.mrb[0].mxu0
      %v1702 = vadd.f32 0.0, %v1701
      %v1703 = vpop.f32.mrb[0].mxu0
      %1704 = vdwg.mxu0
      %v1705 = vadd.f32 %v1622, %v1697
      %v1706 = vadd.f32 %v1627, %v1702
      %v1708 = vlaneseq
      %v1709 = vshrl.u32 %v1708, 7
      %v1710 = vsub.s32 0, %v1709
      %v1711 = vrot.slane %v1279, %v1710
      %v1713 = vadd.f32 %v1705, %v1711
      %v1714 = vadd.f32 %v1706, %v1711
      %v1715 = vmax.f32 %v1713, 0.0
      %v1716 = vmax.f32 %v1714, 0.0
      %1717 = vst [vmem:[%s376] sm:$0xff] %v1715
      %1718 = vst [vmem:[%s376 + $0x8] sm:$0xff] %v1716
      %p1719 = scmp.lt.s32.totalorder %s21, 1
      %s1720 = scalar_select %p1719, %s21, 1
      %s1721 = smul.addr %s1720, 2
      %s1722 = smul.addr %s1721, 8
      %s1723 = scalar_lea.vmem %s10, %s1722
      // Predicated region
      $region61: #{up_forward.1} parent=59 // pred_check
        %p1724 = pneg %p259
      $region62: #{up_forward.1} parent=59 // pred_check_branch
        %1726 = sbr.rel (%p1724) target = $region64
      $region63: #{up_forward.1} parent=59 // pred_region
        _
      $region64: #{up_forward.1} parent=59 // pred_fallthru
        _
    $region60: #{up_forward.1} parent=5 // pred_fallthru
      _
    %p1727 = scmp.le.s32.totalorder 2, %s16
    // Predicated region
    $region65: #{up_forward.1} parent=5 // pred_check
      %p1728 = pneg %p1727
    $region66: #{up_forward.1} parent=5 // pred_check_branch
      %1730 = sbr.rel (%p1728) target = $region68
    $region67: #{up_forward.1} parent=5 // pred_region
      %s1731 = ssub.s32 %s16, 2
      // Predicated region
      $region69: #{up_forward.1} parent=67 // pred_check
        %p1732 = pneg %p265
      $region70: #{up_forward.1} parent=67 // pred_check_branch
        %1734 = sbr.rel (%p1732) target = $region72
      $region71: #{up_forward.1} parent=67 // pred_region
        %p1735 = scmp.lt.s32.totalorder %s22, 1
        %s1736 = scalar_select %p1735, %s22, 1
        %s1737 = smul.addr %s1736, 2
        %s1738 = smul.addr %s1737, 8
        %s1739 = scalar_lea.vmem %s10, %s1738
      $region72: #{up_forward.1} parent=67 // pred_fallthru
        _
    $region68: #{up_forward.1} parent=5 // pred_fallthru
      _
  $region6: #{up_forward.1} parent=0 // loop_footer
    %s20 = sadd.s32 1, %s16
  $region7: #{up_forward.1} parent=0 // loop_footer_branch
    %15 = sbr.rel target = $region3
  $region8: #{up_forward.1} parent=0 // loop_exit
    _

</llo_original>
